<compile_context>
chip_gen: v7x
topology: tpu7x:2x2x1
jax: 0.10.0
libtpu: 0.0.40
codegen_flags: <defaults>
</compile_context>

<pallas_src>
import functools

import jax
import jax.numpy as jnp
from jax import lax
from jax.experimental import pallas as pl
from jax.experimental.pallas import tpu as pltpu


# ----------------------------- Pallas kernels ------------------------------

def _mm_bias_relu_kernel(x_ref, w_ref, b_ref, o_ref):
    """o = relu(x @ w + b); bf16 operands, f32 accumulate/epilogue."""
    acc = jnp.dot(x_ref[...], w_ref[...], preferred_element_type=jnp.float32)
    acc = jnp.maximum(acc + b_ref[...], 0.0)
    o_ref[...] = acc.astype(o_ref.dtype)


def matmul_bias_relu(x, w, b2d, *, out_dtype=jnp.bfloat16, tm_max=512):
    """y = relu(x @ w + b).  x:(M,K) bf16, w:(K,N) bf16, b2d:(1,N) f32 -> (M,N).

    Tiled over M with resident weights/bias so DMA of the patch matrix overlaps
    the GEMM; whole-M block only when it already fits comfortably in VMEM.
    """
    m, k = x.shape
    k2, n = w.shape
    assert k == k2
    tm = m if m <= tm_max else tm_max          # tm_max is a multiple of 8
    grid = (pl.cdiv(m, tm),)
    return pl.pallas_call(
        _mm_bias_relu_kernel,
        out_shape=jax.ShapeDtypeStruct((m, n), out_dtype),
        grid=grid,
        in_specs=[
            pl.BlockSpec((tm, k), lambda i: (i, 0)),
            pl.BlockSpec((k, n), lambda i: (0, 0)),     # weights stay resident
            pl.BlockSpec((1, n), lambda i: (0, 0)),     # bias stays resident
        ],
        out_specs=pl.BlockSpec((tm, n), lambda i: (i, 0)),
        compiler_params=pltpu.CompilerParams(
            dimension_semantics=("parallel",)),
    )(x, w, b2d)


def _conv3_head_kernel(p3_ref, w3_ref, b3_ref, w1_ref, b1_ref, w2_ref, b2_ref,
                       o_ref, *, num_actions):
    """Fused conv3 (as GEMM, spatial 1x1) + flatten + dueling head.

    feat   = relu(p3 @ W3 + b3)                    (B, 64)
    hidden = relu(feat @ [W1a|W1v] + [b1a|b1v])     (B, 1024)
    out2   = hidden @ blockdiag(W2a, W2v) + b2      (B, A+1) = [adv | val]
    q      = val + adv - mean(adv)
    """
    feat = jnp.dot(p3_ref[...], w3_ref[...], preferred_element_type=jnp.float32)
    feat = jnp.maximum(feat + b3_ref[...], 0.0)
    hidden = jnp.dot(feat.astype(w1_ref.dtype), w1_ref[...],
                     preferred_element_type=jnp.float32)
    hidden = jnp.maximum(hidden + b1_ref[...], 0.0)
    out2 = jnp.dot(hidden.astype(w2_ref.dtype), w2_ref[...],
                   preferred_element_type=jnp.float32) + b2_ref[...]
    adv = out2[:, :num_actions]
    val = out2[:, num_actions:num_actions + 1]
    o_ref[...] = (val + adv - jnp.mean(adv, axis=1, keepdims=True)).astype(o_ref.dtype)


def _head_only_kernel(f_ref, w1_ref, b1_ref, w2_ref, b2_ref, o_ref, *, num_actions):
    """Dueling head on a precomputed feature matrix (general spatial sizes)."""
    hidden = jnp.dot(f_ref[...], w1_ref[...], preferred_element_type=jnp.float32)
    hidden = jnp.maximum(hidden + b1_ref[...], 0.0)
    out2 = jnp.dot(hidden.astype(w2_ref.dtype), w2_ref[...],
                   preferred_element_type=jnp.float32) + b2_ref[...]
    adv = out2[:, :num_actions]
    val = out2[:, num_actions:num_actions + 1]
    o_ref[...] = (val + adv - jnp.mean(adv, axis=1, keepdims=True)).astype(o_ref.dtype)


def _full_spec(shape):
    return pl.BlockSpec(shape, lambda i, _n=len(shape): (0,) * _n)


def conv3_dueling_head(patches3, prep, num_actions, *, tb_max=256):
    """patches3:(B, 64*3*3) bf16 -> q-values (B, A) f32 in one fused kernel."""
    B, K3 = patches3.shape
    tb = B if B <= tb_max else tb_max
    return pl.pallas_call(
        functools.partial(_conv3_head_kernel, num_actions=num_actions),
        out_shape=jax.ShapeDtypeStruct((B, num_actions), jnp.float32),
        grid=(pl.cdiv(B, tb),),
        in_specs=[
            pl.BlockSpec((tb, K3), lambda i: (i, 0)),
            _full_spec(prep["c3_wmat"].shape),
            _full_spec(prep["c3_b2d"].shape),
            _full_spec(prep["head_w1"].shape),
            _full_spec(prep["head_b1"].shape),
            _full_spec(prep["head_w2"].shape),
            _full_spec(prep["head_b2"].shape),
        ],
        out_specs=pl.BlockSpec((tb, num_actions), lambda i: (i, 0)),
        compiler_params=pltpu.CompilerParams(
            dimension_semantics=("parallel",)),
    )(patches3, prep["c3_wmat"], prep["c3_b2d"],
      prep["head_w1"], prep["head_b1"], prep["head_w2"], prep["head_b2"])


def dueling_head_only(feat, prep, num_actions, *, tb_max=256):
    """feat:(B, F) bf16 (NHWC flatten order) -> q-values (B, A) f32."""
    B, F = feat.shape
    tb = B if B <= tb_max else tb_max
    return pl.pallas_call(
        functools.partial(_head_only_kernel, num_actions=num_actions),
        out_shape=jax.ShapeDtypeStruct((B, num_actions), jnp.float32),
        grid=(pl.cdiv(B, tb),),
        in_specs=[
            pl.BlockSpec((tb, F), lambda i: (i, 0)),
            _full_spec(prep["head_w1"].shape),
            _full_spec(prep["head_b1"].shape),
            _full_spec(prep["head_w2"].shape),
            _full_spec(prep["head_b2"].shape),
        ],
        out_specs=pl.BlockSpec((tb, num_actions), lambda i: (i, 0)),
        compiler_params=pltpu.CompilerParams(
            dimension_semantics=("parallel",)),
    )(feat, prep["head_w1"], prep["head_b1"], prep["head_w2"], prep["head_b2"])


# ------------------------------- glue (JAX) --------------------------------

def im2col_nhwc(x, kh, kw, stride):
    """x:(N,H,W,C) -> patches:(N*OH*OW, C*KH*KW) with (C, kh, kw) column order
    (matching torch's OIHW weight flattening)."""
    N, H, W, C = x.shape
    oh = (H - kh) // stride + 1
    ow = (W - kw) // stride + 1
    cols = []
    for i in range(kh):
        for j in range(kw):
            cols.append(x[:, i:i + stride * oh:stride, j:j + stride * ow:stride, :])
    p = jnp.stack(cols, axis=-1)                     # (N, oh, ow, C, kh*kw)
    return p.reshape(N * oh * ow, C * kh * kw), oh, ow


def conv2d_relu_nhwc(x, wmat, b2d, kh, kw, stride):
    """NHWC conv (valid) + ReLU via im2col + Pallas GEMM; output stays NHWC."""
    N = x.shape[0]
    patches, oh, ow = im2col_nhwc(x, kh, kw, stride)
    y = matmul_bias_relu(patches, wmat, b2d)         # (N*oh*ow, O) bf16
    return y.reshape(N, oh, ow, wmat.shape[1])


# --------------------------- parameters / init ------------------------------

def orthogonal(key, rows, cols, gain):
    """Deterministic orthogonal init (torch.nn.init.orthogonal_ style)."""
    n = max(rows, cols)
    a = jax.random.normal(key, (n, n), dtype=jnp.float32)
    q, r = jnp.linalg.qr(a)
    q = q * jnp.sign(jnp.diag(r))[None, :]
    return gain * q[:rows, :cols]


def make_params(key, in_channels, num_actions, feat_size):
    """Torch-layout parameters (used by the f32 reference)."""
    gain = jnp.sqrt(2.0)  # nn.init.calculate_gain('relu')
    ks = jax.random.split(key, 7)
    p = {}
    # conv weights torch-style (O, C, kh, kw); orthogonal over flattened (O, C*kh*kw)
    p["c1_w"] = orthogonal(ks[0], 32, in_channels * 8 * 8, gain).reshape(32, in_channels, 8, 8)
    p["c1_b"] = jnp.zeros((32,), jnp.float32)
    p["c2_w"] = orthogonal(ks[1], 64, 32 * 4 * 4, gain).reshape(64, 32, 4, 4)
    p["c2_b"] = jnp.zeros((64,), jnp.float32)
    p["c3_w"] = orthogonal(ks[2], 64, 64 * 3 * 3, gain).reshape(64, 64, 3, 3)
    p["c3_b"] = jnp.zeros((64,), jnp.float32)
    # linear weights stored as (in, out) == torch weight.T
    p["a1_w"] = orthogonal(ks[3], 512, feat_size, gain).T
    p["a1_b"] = jnp.zeros((512,), jnp.float32)
    p["a2_w"] = orthogonal(ks[4], num_actions, 512, gain).T
    p["a2_b"] = jnp.zeros((num_actions,), jnp.float32)
    p["v1_w"] = orthogonal(ks[5], 512, feat_size, gain).T
    p["v1_b"] = jnp.zeros((512,), jnp.float32)
    p["v2_w"] = orthogonal(ks[6], 1, 512, gain).T
    p["v2_b"] = jnp.zeros((1,), jnp.float32)
    return p


def prepare_params(p, num_actions):
    """One-time re-layout / cast of params into the kernel-friendly form:
    conv weights (C*kh*kw, O) bf16, biases (1,N) f32, and concatenated /
    block-diagonal dueling-head weights."""
    prep = {}

    def conv_wmat(w):                                # (O,C,kh,kw) -> (C*kh*kw, O)
        O = w.shape[0]
        return jnp.asarray(w.reshape(O, -1).T, jnp.bfloat16)

    prep["c1_wmat"] = conv_wmat(p["c1_w"])
    prep["c1_b2d"] = p["c1_b"].reshape(1, -1).astype(jnp.float32)
    prep["c2_wmat"] = conv_wmat(p["c2_w"])
    prep["c2_b2d"] = p["c2_b"].reshape(1, -1).astype(jnp.float32)
    prep["c3_wmat"] = conv_wmat(p["c3_w"])
    prep["c3_b2d"] = p["c3_b"].reshape(1, -1).astype(jnp.float32)

    # Head layer 1: concat advantage & value -> (F, 1024), rows permuted from
    # torch's NCHW flatten order to the NHWC flatten order used by the kernels
    # (identity when the conv3 output is 1x1 spatially).
    F = p["a1_w"].shape[0]
    S3 = F // 64
    r = jnp.arange(F)
    idx = (r % 64) * S3 + (r // 64)                  # nhwc row -> torch row
    w1 = jnp.concatenate([p["a1_w"], p["v1_w"]], axis=1)[idx, :]       # (F, 1024)
    b1 = jnp.concatenate([p["a1_b"], p["v1_b"]], axis=0).reshape(1, -1)

    # Head layer 2: block-diagonal (1024, A+1) so [ha|hv] @ W2 = [adv | val].
    H = p["a2_w"].shape[0]                           # 512
    A = num_actions
    w2 = jnp.zeros((2 * H, A + 1), jnp.float32)
    w2 = w2.at[:H, :A].set(p["a2_w"])
    w2 = w2.at[H:, A:].set(p["v2_w"])
    b2 = jnp.concatenate([p["a2_b"], p["v2_b"]], axis=0).reshape(1, -1)

    prep["head_w1"] = w1.astype(jnp.bfloat16)
    prep["head_b1"] = b1.astype(jnp.float32)
    prep["head_w2"] = w2.astype(jnp.bfloat16)
    prep["head_b2"] = b2.astype(jnp.float32)
    return prep


# ------------------------------ forward pass --------------------------------

def dueling_dqn_forward(prep, x_nchw, *, num_actions):
    # Single layout change at entry; everything else stays NHWC.
    x = jnp.asarray(x_nchw.transpose(0, 2, 3, 1), jnp.bfloat16)
    h = conv2d_relu_nhwc(x, prep["c1_wmat"], prep["c1_b2d"], 8, 8, 4)
    h = conv2d_relu_nhwc(h, prep["c2_wmat"], prep["c2_b2d"], 4, 4, 2)
    N, H2, W2, _ = h.shape
    oh3, ow3 = H2 - 2, W2 - 2
    if oh3 == 1 and ow3 == 1:
        # conv3 output is (N,64,1,1): flatten is free, fuse conv3 + dueling head.
        patches3, _, _ = im2col_nhwc(h, 3, 3, 1)     # (N, 64*3*3)
        return conv3_dueling_head(patches3, prep, num_actions)
    # General spatial size: conv3 as its own GEMM, NHWC flatten (head_w1 rows are
    # already permuted to NHWC order), then the fused head-only kernel.
    h3 = conv2d_relu_nhwc(h, prep["c3_wmat"], prep["c3_b2d"], 3, 3, 1)
    feat = h3.reshape(N, -1)
    return dueling_head_only(feat, prep, num_actions)


def dueling_dqn_reference(params, x):
    """Pure-JAX f32 reference (torch semantics) for correctness checking."""
    dn = ("NCHW", "OIHW", "NCHW")
    h = x
    for w, b, s in [(params["c1_w"], params["c1_b"], 4),
                    (params["c2_w"], params["c2_b"], 2),
                    (params["c3_w"], params["c3_b"], 1)]:
        h = lax.conv_general_dilated(h, w, (s, s), "VALID", dimension_numbers=dn)
        h = jnp.maximum(h + b[None, :, None, None], 0.0)
    feat = h.reshape(h.shape[0], -1)
    ha = jnp.maximum(feat @ params["a1_w"] + params["a1_b"], 0.0)
    adv = ha @ params["a2_w"] + params["a2_b"]
    hv = jnp.maximum(feat @ params["v1_w"] + params["v1_b"], 0.0)
    val = hv @ params["v2_w"] + params["v2_b"]
    return val + adv - adv.mean(axis=1, keepdims=True)


# ---------------------------------- main -------------------------------------

if __name__ == "__main__":
    # Conv-stack-consistent shapes: 36x36 input -> 8 -> 3 -> 1 spatial.
    batch, in_channels, spatial, num_actions = 2, 4, 36, 6

    key = jax.random.PRNGKey(0)
    k_x, k_p = jax.random.split(key)
    x = jax.random.normal(k_x, (batch, in_channels, spatial, spatial), dtype=jnp.float32)

    # _feature_size(): 64 channels * s3 * s3 spatial
    s1 = (spatial - 8) // 4 + 1
    s2 = (s1 - 4) // 2 + 1
    s3 = (s2 - 3) // 1 + 1
    feat_size = 64 * s3 * s3

    params = make_params(k_p, in_channels, num_actions, feat_size)
    prep = prepare_params(params, num_actions)

    fwd = jax.jit(functools.partial(dueling_dqn_forward, num_actions=num_actions))
    q = fwd(prep, x)
    q = jax.block_until_ready(q)

    q_ref = dueling_dqn_reference(params, x)
    assert q.shape == (batch, num_actions)
    # bf16 MXU operands vs f32 reference -> loosened tolerance.
    assert jnp.allclose(q, q_ref, atol=1e-1, rtol=1e-1), (
        "mismatch vs reference: max abs diff "
        f"{float(jnp.max(jnp.abs(q - q_ref)))}")

    print("KERNEL_OK")
</pallas_src>

<mosaic_0001>
module attributes {stable_mosaic.version = 11 : i64} {
  func.func @_mm_bias_relu_kernel(%arg0: i32, %arg1: memref<128x256xbf16, #tpu.memory_space<vmem>>, %arg2: memref<256x32xbf16, #tpu.memory_space<vmem>>, %arg3: memref<1x32xf32, #tpu.memory_space<vmem>>, %arg4: memref<128x32xbf16, #tpu.memory_space<vmem>>) attributes {dimension_semantics = [#tpu.dimension_semantics<parallel>], iteration_bounds = array<i64: 1>, scalar_prefetch = 0 : i64, scratch_operands = 0 : i64, tpu.core_type = #tpu.core_type<tc>, window_params = [{transform_indices = @transform_0, window_bounds = array<i64: 128, 256>}, {pipeline_mode = #tpu.pipeline_mode<synchronous>, transform_indices = @transform_1, window_bounds = array<i64: 256, 32>}, {pipeline_mode = #tpu.pipeline_mode<synchronous>, transform_indices = @transform_2, window_bounds = array<i64: 1, 32>}, {transform_indices = @transform_3, window_bounds = array<i64: 128, 32>}]} {
    %c0 = arith.constant 0 : index
    %c0_0 = arith.constant 0 : index
    %0 = vector.load %arg1[%c0, %c0_0] : memref<128x256xbf16, #tpu.memory_space<vmem>>, vector<128x256xbf16>
    %c0_1 = arith.constant 0 : index
    %c0_2 = arith.constant 0 : index
    %1 = vector.load %arg2[%c0_1, %c0_2] : memref<256x32xbf16, #tpu.memory_space<vmem>>, vector<256x32xbf16>
    %cst = arith.constant dense<0.000000e+00> : vector<128x32xf32>
    %2 = tpu.matmul %0, %1, %cst {dimension_numbers = #tpu.dot_dimension_numbers<[1], [0], [0], [1], [0, 0, 1, 1], [], []>} : vector<128x256xbf16>, vector<256x32xbf16>, vector<128x32xf32> -> vector<128x32xf32>
    %c0_3 = arith.constant 0 : index
    %c0_4 = arith.constant 0 : index
    %3 = vector.load %arg3[%c0_3, %c0_4] : memref<1x32xf32, #tpu.memory_space<vmem>>, vector<1x32xf32>
    %4 = vector.broadcast %3 : vector<1x32xf32> to vector<128x32xf32>
    %5 = arith.addf %2, %4 : vector<128x32xf32>
    %cst_5 = arith.constant 0.000000e+00 : f32
    %6 = vector.broadcast %cst_5 : f32 to vector<128x32xf32>
    %7 = arith.maximumf %5, %6 : vector<128x32xf32>
    %8 = arith.truncf %7 : vector<128x32xf32> to vector<128x32xbf16>
    %c0_6 = arith.constant 0 : index
    %c0_7 = arith.constant 0 : index
    %9 = vector.load %arg4[%c0_6, %c0_7] : memref<128x32xbf16, #tpu.memory_space<vmem>>, vector<128x32xbf16>
    tpu.vector_store %arg4[%c0_6, %c0_7], %8 {strides = array<i32>} : memref<128x32xbf16, #tpu.memory_space<vmem>>, vector<128x32xbf16>,
    return
  }
  func.func @transform_0(%arg0: i32) -> (i32, i32) {
    %c0_i32 = arith.constant 0 : i32
    %c0_i32_0 = arith.constant 0 : i32
    return %arg0, %c0_i32 : i32, i32
  }
  func.func @transform_1(%arg0: i32) -> (i32, i32) {
    %c0_i32 = arith.constant 0 : i32
    %c0_i32_0 = arith.constant 0 : i32
    %c0_i32_1 = arith.constant 0 : i32
    return %c0_i32, %c0_i32_0 : i32, i32
  }
  func.func @transform_2(%arg0: i32) -> (i32, i32) {
    %c0_i32 = arith.constant 0 : i32
    %c0_i32_0 = arith.constant 0 : i32
    %c0_i32_1 = arith.constant 0 : i32
    return %c0_i32, %c0_i32_0 : i32, i32
  }
  func.func @transform_3(%arg0: i32) -> (i32, i32) {
    %c0_i32 = arith.constant 0 : i32
    %c0_i32_0 = arith.constant 0 : i32
    return %arg0, %c0_i32 : i32, i32
  }
}

module attributes {stable_mosaic.version = 11 : i64} {
  func.func @_mm_bias_relu_kernel(%arg0: i32, %arg1: memref<18x512xbf16, #tpu.memory_space<vmem>>, %arg2: memref<512x64xbf16, #tpu.memory_space<vmem>>, %arg3: memref<1x64xf32, #tpu.memory_space<vmem>>, %arg4: memref<18x64xbf16, #tpu.memory_space<vmem>>) attributes {dimension_semantics = [#tpu.dimension_semantics<parallel>], iteration_bounds = array<i64: 1>, scalar_prefetch = 0 : i64, scratch_operands = 0 : i64, tpu.core_type = #tpu.core_type<tc>, window_params = [{transform_indices = @transform_0, window_bounds = array<i64: 18, 512>}, {pipeline_mode = #tpu.pipeline_mode<synchronous>, transform_indices = @transform_1, window_bounds = array<i64: 512, 64>}, {pipeline_mode = #tpu.pipeline_mode<synchronous>, transform_indices = @transform_2, window_bounds = array<i64: 1, 64>}, {transform_indices = @transform_3, window_bounds = array<i64: 18, 64>}]} {
    %c0 = arith.constant 0 : index
    %c0_0 = arith.constant 0 : index
    %0 = vector.load %arg1[%c0, %c0_0] : memref<18x512xbf16, #tpu.memory_space<vmem>>, vector<18x512xbf16>
    %c0_1 = arith.constant 0 : index
    %c0_2 = arith.constant 0 : index
    %1 = vector.load %arg2[%c0_1, %c0_2] : memref<512x64xbf16, #tpu.memory_space<vmem>>, vector<512x64xbf16>
    %cst = arith.constant dense<0.000000e+00> : vector<18x64xf32>
    %2 = tpu.matmul %0, %1, %cst {dimension_numbers = #tpu.dot_dimension_numbers<[1], [0], [0], [1], [0, 0, 1, 1], [], []>} : vector<18x512xbf16>, vector<512x64xbf16>, vector<18x64xf32> -> vector<18x64xf32>
    %c0_3 = arith.constant 0 : index
    %c0_4 = arith.constant 0 : index
    %3 = vector.load %arg3[%c0_3, %c0_4] : memref<1x64xf32, #tpu.memory_space<vmem>>, vector<1x64xf32>
    %4 = vector.broadcast %3 : vector<1x64xf32> to vector<18x64xf32>
    %5 = arith.addf %2, %4 : vector<18x64xf32>
    %cst_5 = arith.constant 0.000000e+00 : f32
    %6 = vector.broadcast %cst_5 : f32 to vector<18x64xf32>
    %7 = arith.maximumf %5, %6 : vector<18x64xf32>
    %8 = arith.truncf %7 : vector<18x64xf32> to vector<18x64xbf16>
    %c0_6 = arith.constant 0 : index
    %c0_7 = arith.constant 0 : index
    %9 = vector.load %arg4[%c0_6, %c0_7] : memref<18x64xbf16, #tpu.memory_space<vmem>>, vector<18x64xbf16>
    tpu.vector_store %arg4[%c0_6, %c0_7], %8 {strides = array<i32>} : memref<18x64xbf16, #tpu.memory_space<vmem>>, vector<18x64xbf16>,
    return
  }
  func.func @transform_0(%arg0: i32) -> (i32, i32) {
    %c0_i32 = arith.constant 0 : i32
    %c0_i32_0 = arith.constant 0 : i32
    return %arg0, %c0_i32 : i32, i32
  }
  func.func @transform_1(%arg0: i32) -> (i32, i32) {
    %c0_i32 = arith.constant 0 : i32
    %c0_i32_0 = arith.constant 0 : i32
    %c0_i32_1 = arith.constant 0 : i32
    return %c0_i32, %c0_i32_0 : i32, i32
  }
  func.func @transform_2(%arg0: i32) -> (i32, i32) {
    %c0_i32 = arith.constant 0 : i32
    %c0_i32_0 = arith.constant 0 : i32
    %c0_i32_1 = arith.constant 0 : i32
    return %c0_i32, %c0_i32_0 : i32, i32
  }
  func.func @transform_3(%arg0: i32) -> (i32, i32) {
    %c0_i32 = arith.constant 0 : i32
    %c0_i32_0 = arith.constant 0 : i32
    return %arg0, %c0_i32 : i32, i32
  }
}

module attributes {stable_mosaic.version = 11 : i64} {
  func.func @_conv3_head_kernel(%arg0: i32, %arg1: memref<2x576xbf16, #tpu.memory_space<vmem>>, %arg2: memref<576x64xbf16, #tpu.memory_space<vmem>>, %arg3: memref<1x64xf32, #tpu.memory_space<vmem>>, %arg4: memref<64x1024xbf16, #tpu.memory_space<vmem>>, %arg5: memref<1x1024xf32, #tpu.memory_space<vmem>>, %arg6: memref<1024x7xbf16, #tpu.memory_space<vmem>>, %arg7: memref<1x7xf32, #tpu.memory_space<vmem>>, %arg8: memref<2x6xf32, #tpu.memory_space<vmem>>) attributes {dimension_semantics = [#tpu.dimension_semantics<parallel>], iteration_bounds = array<i64: 1>, scalar_prefetch = 0 : i64, scratch_operands = 0 : i64, tpu.core_type = #tpu.core_type<tc>, window_params = [{transform_indices = @transform_0, window_bounds = array<i64: 2, 576>}, {pipeline_mode = #tpu.pipeline_mode<synchronous>, transform_indices = @transform_1, window_bounds = array<i64: 576, 64>}, {pipeline_mode = #tpu.pipeline_mode<synchronous>, transform_indices = @transform_2, window_bounds = array<i64: 1, 64>}, {pipeline_mode = #tpu.pipeline_mode<synchronous>, transform_indices = @transform_3, window_bounds = array<i64: 64, 1024>}, {pipeline_mode = #tpu.pipeline_mode<synchronous>, transform_indices = @transform_4, window_bounds = array<i64: 1, 1024>}, {pipeline_mode = #tpu.pipeline_mode<synchronous>, transform_indices = @transform_5, window_bounds = array<i64: 1024, 7>}, {pipeline_mode = #tpu.pipeline_mode<synchronous>, transform_indices = @transform_6, window_bounds = array<i64: 1, 7>}, {transform_indices = @transform_7, window_bounds = array<i64: 2, 6>}]} {
    %c0 = arith.constant 0 : index
    %c0_0 = arith.constant 0 : index
    %0 = vector.load %arg1[%c0, %c0_0] : memref<2x576xbf16, #tpu.memory_space<vmem>>, vector<2x576xbf16>
    %c0_1 = arith.constant 0 : index
    %c0_2 = arith.constant 0 : index
    %1 = vector.load %arg2[%c0_1, %c0_2] : memref<576x64xbf16, #tpu.memory_space<vmem>>, vector<576x64xbf16>
    %cst = arith.constant dense<0.000000e+00> : vector<2x64xf32>
    %2 = tpu.matmul %0, %1, %cst {dimension_numbers = #tpu.dot_dimension_numbers<[1], [0], [0], [1], [0, 0, 1, 1], [], []>} : vector<2x576xbf16>, vector<576x64xbf16>, vector<2x64xf32> -> vector<2x64xf32>
    %c0_3 = arith.constant 0 : index
    %c0_4 = arith.constant 0 : index
    %3 = vector.load %arg3[%c0_3, %c0_4] : memref<1x64xf32, #tpu.memory_space<vmem>>, vector<1x64xf32>
    %4 = vector.broadcast %3 : vector<1x64xf32> to vector<2x64xf32>
    %5 = arith.addf %2, %4 : vector<2x64xf32>
    %cst_5 = arith.constant 0.000000e+00 : f32
    %6 = vector.broadcast %cst_5 : f32 to vector<2x64xf32>
    %7 = arith.maximumf %5, %6 : vector<2x64xf32>
    %8 = arith.truncf %7 : vector<2x64xf32> to vector<2x64xbf16>
    %c0_6 = arith.constant 0 : index
    %c0_7 = arith.constant 0 : index
    %9 = vector.load %arg4[%c0_6, %c0_7] : memref<64x1024xbf16, #tpu.memory_space<vmem>>, vector<64x1024xbf16>
    %cst_8 = arith.constant dense<0.000000e+00> : vector<2x1024xf32>
    %10 = tpu.matmul %8, %9, %cst_8 {dimension_numbers = #tpu.dot_dimension_numbers<[1], [0], [0], [1], [0, 0, 1, 1], [], []>} : vector<2x64xbf16>, vector<64x1024xbf16>, vector<2x1024xf32> -> vector<2x1024xf32>
    %c0_9 = arith.constant 0 : index
    %c0_10 = arith.constant 0 : index
    %11 = vector.load %arg5[%c0_9, %c0_10] : memref<1x1024xf32, #tpu.memory_space<vmem>>, vector<1x1024xf32>
    %12 = vector.broadcast %11 : vector<1x1024xf32> to vector<2x1024xf32>
    %13 = arith.addf %10, %12 : vector<2x1024xf32>
    %cst_11 = arith.constant 0.000000e+00 : f32
    %14 = vector.broadcast %cst_11 : f32 to vector<2x1024xf32>
    %15 = arith.maximumf %13, %14 : vector<2x1024xf32>
    %16 = arith.truncf %15 : vector<2x1024xf32> to vector<2x1024xbf16>
    %c0_12 = arith.constant 0 : index
    %c0_13 = arith.constant 0 : index
    %17 = vector.load %arg6[%c0_12, %c0_13] : memref<1024x7xbf16, #tpu.memory_space<vmem>>, vector<1024x7xbf16>
    %cst_14 = arith.constant dense<0.000000e+00> : vector<2x7xf32>
    %18 = tpu.matmul %16, %17, %cst_14 {dimension_numbers = #tpu.dot_dimension_numbers<[1], [0], [0], [1], [0, 0, 1, 1], [], []>} : vector<2x1024xbf16>, vector<1024x7xbf16>, vector<2x7xf32> -> vector<2x7xf32>
    %c0_15 = arith.constant 0 : index
    %c0_16 = arith.constant 0 : index
    %19 = vector.load %arg7[%c0_15, %c0_16] : memref<1x7xf32, #tpu.memory_space<vmem>>, vector<1x7xf32>
    %20 = vector.broadcast %19 : vector<1x7xf32> to vector<2x7xf32>
    %21 = arith.addf %18, %20 : vector<2x7xf32>
    %22 = vector.extract_strided_slice %21 {offsets = [0, 0], sizes = [2, 6], strides = [1, 1]} : vector<2x7xf32> to vector<2x6xf32>
    %23 = vector.extract_strided_slice %21 {offsets = [0, 6], sizes = [2, 1], strides = [1, 1]} : vector<2x7xf32> to vector<2x1xf32>
    %24 = vector.broadcast %23 : vector<2x1xf32> to vector<2x6xf32>
    %25 = arith.addf %24, %22 : vector<2x6xf32>
    %cst_17 = arith.constant dense<0.000000e+00> : vector<2xf32>
    %26 = vector.multi_reduction <add>, %22, %cst_17 [1] : vector<2x6xf32> to vector<2xf32>
    %27 = vector.shape_cast %26 : vector<2xf32> to vector<2x1xf32>
    %cst_18 = arith.constant 6.000000e+00 : f32
    %28 = vector.broadcast %cst_18 : f32 to vector<2x1xf32>
    %29 = arith.divf %27, %28 : vector<2x1xf32>
    %30 = vector.broadcast %29 : vector<2x1xf32> to vector<2x6xf32>
    %31 = arith.subf %25, %30 : vector<2x6xf32>
    %c0_19 = arith.constant 0 : index
    %c0_20 = arith.constant 0 : index
    %32 = vector.load %arg8[%c0_19, %c0_20] : memref<2x6xf32, #tpu.memory_space<vmem>>, vector<2x6xf32>
    tpu.vector_store %arg8[%c0_19, %c0_20], %31 {strides = array<i32>} : memref<2x6xf32, #tpu.memory_space<vmem>>, vector<2x6xf32>,
    return
  }
  func.func @transform_0(%arg0: i32) -> (i32, i32) {
    %c0_i32 = arith.constant 0 : i32
    %c0_i32_0 = arith.constant 0 : i32
    return %arg0, %c0_i32 : i32, i32
  }
  func.func @transform_1(%arg0: i32) -> (i32, i32) {
    %c0_i32 = arith.constant 0 : i32
    %c0_i32_0 = arith.constant 0 : i32
    %c0_i32_1 = arith.constant 0 : i32
    return %c0_i32, %c0_i32_0 : i32, i32
  }
  func.func @transform_2(%arg0: i32) -> (i32, i32) {
    %c0_i32 = arith.constant 0 : i32
    %c0_i32_0 = arith.constant 0 : i32
    %c0_i32_1 = arith.constant 0 : i32
    return %c0_i32, %c0_i32_0 : i32, i32
  }
  func.func @transform_3(%arg0: i32) -> (i32, i32) {
    %c0_i32 = arith.constant 0 : i32
    %c0_i32_0 = arith.constant 0 : i32
    %c0_i32_1 = arith.constant 0 : i32
    return %c0_i32, %c0_i32_0 : i32, i32
  }
  func.func @transform_4(%arg0: i32) -> (i32, i32) {
    %c0_i32 = arith.constant 0 : i32
    %c0_i32_0 = arith.constant 0 : i32
    %c0_i32_1 = arith.constant 0 : i32
    return %c0_i32, %c0_i32_0 : i32, i32
  }
  func.func @transform_5(%arg0: i32) -> (i32, i32) {
    %c0_i32 = arith.constant 0 : i32
    %c0_i32_0 = arith.constant 0 : i32
    %c0_i32_1 = arith.constant 0 : i32
    return %c0_i32, %c0_i32_0 : i32, i32
  }
  func.func @transform_6(%arg0: i32) -> (i32, i32) {
    %c0_i32 = arith.constant 0 : i32
    %c0_i32_0 = arith.constant 0 : i32
    %c0_i32_1 = arith.constant 0 : i32
    return %c0_i32, %c0_i32_0 : i32, i32
  }
  func.func @transform_7(%arg0: i32) -> (i32, i32) {
    %c0_i32 = arith.constant 0 : i32
    %c0_i32_0 = arith.constant 0 : i32
    return %arg0, %c0_i32 : i32, i32
  }
}

</mosaic_0001>

<llo_original>
// kernel: dueling_dqn_forward.3
$region0: #{dueling_dqn_forward.3}
  #allocation0 [shape = 'u32[]', space=smem, size = 0x4, offset = 0x4, fixed_abs, tag = 'smem constant byte address 0x4 - core index']
  #allocation1 [shape = 'u32[144,128]{1,0:T(1,128)}', space=vmem, size = 0x12000, scoped, tag = 'internal scratch']
  %s0 = inlined_call_operand.vmem [shape: bf16[128,256], index: 0, kind: input, shape index: {}]
  %s1 = inlined_call_operand.vmem [shape: bf16[256,32], index: 1, kind: input, shape index: {}]
  %s2 = inlined_call_operand.vmem [shape: f32[1,32], index: 2, kind: input, shape index: {}]
  %s3 = inlined_call_operand.vmem [shape: bf16[128,32], index: 3, kind: output, shape index: {}]
  %s4 = sld [smem:[#allocation0]]
  $region22: #{dueling_dqn_forward.3} parent=0
    _
  %s6 = ssub.s32 1, %s4
  %s7 = scalar_select 0, %s6, %s4
  // Predicated region
  $region2: #{dueling_dqn_forward.3} parent=0 // pred_check
    _
  $region3: #{dueling_dqn_forward.3} parent=0 // pred_check_branch
    %9 = sbr.rel (0) target = $region5
  $region4: #{dueling_dqn_forward.3} parent=0 // pred_region
    _
  $region5: #{dueling_dqn_forward.3} parent=0 // pred_fallthru
    _
  // Predicated region
  $region6: #{dueling_dqn_forward.3} parent=0 // pred_check
    _
  $region7: #{dueling_dqn_forward.3} parent=0 // pred_check_branch
    %11 = sbr.rel (0) target = $region9
  $region8: #{dueling_dqn_forward.3} parent=0 // pred_region
    _
  $region9: #{dueling_dqn_forward.3} parent=0 // pred_fallthru
    _
  // Predicated region
  $region10: #{dueling_dqn_forward.3} parent=0 // pred_check
    _
  $region11: #{dueling_dqn_forward.3} parent=0 // pred_check_branch
    %13 = sbr.rel (0) target = $region13
  $region12: #{dueling_dqn_forward.3} parent=0 // pred_region
    _
  $region13: #{dueling_dqn_forward.3} parent=0 // pred_fallthru
    _
  %v15 = vld [vmem:[%s0] sm:$0xff]
  %v16 = vld [vmem:[%s0 + $0x8] sm:$0xff]
  %v17 = vld [vmem:[%s0 + $0x10] sm:$0xff]
  %v18 = vld [vmem:[%s0 + $0x18] sm:$0xff]
  %v19 = vld [vmem:[%s0 + $0x20] sm:$0xff]
  %v20 = vld [vmem:[%s0 + $0x28] sm:$0xff]
  %v21 = vld [vmem:[%s0 + $0x30] sm:$0xff]
  %v22 = vld [vmem:[%s0 + $0x38] sm:$0xff]
  %v23 = vld [vmem:[%s0 + $0x40] sm:$0xff]
  %v24 = vld [vmem:[%s0 + $0x48] sm:$0xff]
  %v25 = vld [vmem:[%s0 + $0x50] sm:$0xff]
  %v26 = vld [vmem:[%s0 + $0x58] sm:$0xff]
  %v27 = vld [vmem:[%s0 + $0x60] sm:$0xff]
  %v28 = vld [vmem:[%s0 + $0x68] sm:$0xff]
  %v29 = vld [vmem:[%s0 + $0x70] sm:$0xff]
  %v30 = vld [vmem:[%s0 + $0x78] sm:$0xff]
  %v31 = vld [vmem:[%s1] sm:$0xf]
  %v32 = vld [vmem:[%s1 + $0x4] sm:$0xf]
  %v33 = vld [vmem:[%s1 + $0x8] sm:$0xf]
  %v34 = vld [vmem:[%s1 + $0xc] sm:$0xf]
  %v35 = vld [vmem:[%s1 + $0x10] sm:$0xf]
  %v36 = vld [vmem:[%s1 + $0x14] sm:$0xf]
  %v37 = vld [vmem:[%s1 + $0x18] sm:$0xf]
  %v38 = vld [vmem:[%s1 + $0x1c] sm:$0xf]
  %v39 = vld [vmem:[%s1 + $0x20] sm:$0xf]
  %v40 = vld [vmem:[%s1 + $0x24] sm:$0xf]
  %v41 = vld [vmem:[%s1 + $0x28] sm:$0xf]
  %v42 = vld [vmem:[%s1 + $0x2c] sm:$0xf]
  %v43 = vld [vmem:[%s1 + $0x30] sm:$0xf]
  %v44 = vld [vmem:[%s1 + $0x34] sm:$0xf]
  %v45 = vld [vmem:[%s1 + $0x38] sm:$0xf]
  %v46 = vld [vmem:[%s1 + $0x3c] sm:$0xf]
  %v47 = vld [vmem:[%s1 + $0x40] sm:$0xf]
  %v48 = vld [vmem:[%s1 + $0x44] sm:$0xf]
  %v49 = vld [vmem:[%s1 + $0x48] sm:$0xf]
  %v50 = vld [vmem:[%s1 + $0x4c] sm:$0xf]
  %v51 = vld [vmem:[%s1 + $0x50] sm:$0xf]
  %v52 = vld [vmem:[%s1 + $0x54] sm:$0xf]
  %v53 = vld [vmem:[%s1 + $0x58] sm:$0xf]
  %v54 = vld [vmem:[%s1 + $0x5c] sm:$0xf]
  %v55 = vld [vmem:[%s1 + $0x60] sm:$0xf]
  %v56 = vld [vmem:[%s1 + $0x64] sm:$0xf]
  %v57 = vld [vmem:[%s1 + $0x68] sm:$0xf]
  %v58 = vld [vmem:[%s1 + $0x6c] sm:$0xf]
  %v59 = vld [vmem:[%s1 + $0x70] sm:$0xf]
  %v60 = vld [vmem:[%s1 + $0x74] sm:$0xf]
  %v61 = vld [vmem:[%s1 + $0x78] sm:$0xf]
  %v62 = vld [vmem:[%s1 + $0x7c] sm:$0xf]
  %v63 = vld [vmem:[%s2] sm:$0x1]
  %v65 = vlaneseq
  %v66 = vshrl.u32 %v65, 7
  %v67 = vsub.s32 0, %v66
  %v68 = vrot.slane %v63, %v67
  %v86 = vunpack.c.l.b16 %v15
  %v87 = vunpack.c.h.b16 %v15
  %v88 = vunpack.c.l.b16 %v16
  %v89 = vunpack.c.h.b16 %v16
  %v90 = vunpack.c.l.b16 %v17
  %v91 = vunpack.c.h.b16 %v17
  %v92 = vunpack.c.l.b16 %v18
  %v93 = vunpack.c.h.b16 %v18
  %v94 = vunpack.c.l.b16 %v19
  %v95 = vunpack.c.h.b16 %v19
  %v96 = vunpack.c.l.b16 %v20
  %v97 = vunpack.c.h.b16 %v20
  %v98 = vunpack.c.l.b16 %v21
  %v99 = vunpack.c.h.b16 %v21
  %v100 = vunpack.c.l.b16 %v22
  %v101 = vunpack.c.h.b16 %v22
  %v102 = vunpack.c.l.b16 %v23
  %v103 = vunpack.c.h.b16 %v23
  %v104 = vunpack.c.l.b16 %v24
  %v105 = vunpack.c.h.b16 %v24
  %v106 = vunpack.c.l.b16 %v25
  %v107 = vunpack.c.h.b16 %v25
  %v108 = vunpack.c.l.b16 %v26
  %v109 = vunpack.c.h.b16 %v26
  %v110 = vunpack.c.l.b16 %v27
  %v111 = vunpack.c.h.b16 %v27
  %v112 = vunpack.c.l.b16 %v28
  %v113 = vunpack.c.h.b16 %v28
  %v114 = vunpack.c.l.b16 %v29
  %v115 = vunpack.c.h.b16 %v29
  %v116 = vunpack.c.l.b16 %v30
  %v117 = vunpack.c.h.b16 %v30
  %v118 = vpack.c.b16 %v88, %v86
  %v119 = vpack.c.b16 %v89, %v87
  %v120 = vpack.c.b16 %v92, %v90
  %v121 = vpack.c.b16 %v93, %v91
  %v122 = vpack.c.b16 %v96, %v94
  %v123 = vpack.c.b16 %v97, %v95
  %v124 = vpack.c.b16 %v100, %v98
  %v125 = vpack.c.b16 %v101, %v99
  %v126 = vpack.c.b16 %v104, %v102
  %v127 = vpack.c.b16 %v105, %v103
  %v128 = vpack.c.b16 %v108, %v106
  %v129 = vpack.c.b16 %v109, %v107
  %v130 = vpack.c.b16 %v112, %v110
  %v131 = vpack.c.b16 %v113, %v111
  %v132 = vpack.c.b16 %v116, %v114
  %v133 = vpack.c.b16 %v117, %v115
  %v182 = vunpack.c.l.b16 %v31
  %v183 = vunpack.c.l.b16 %v32
  %v184 = vunpack.c.l.b16 %v33
  %v185 = vunpack.c.l.b16 %v34
  %v186 = vunpack.c.l.b16 %v35
  %v187 = vunpack.c.l.b16 %v36
  %v188 = vunpack.c.l.b16 %v37
  %v189 = vunpack.c.l.b16 %v38
  %v190 = vunpack.c.l.b16 %v39
  %v191 = vunpack.c.l.b16 %v40
  %v192 = vunpack.c.l.b16 %v41
  %v193 = vunpack.c.l.b16 %v42
  %v194 = vunpack.c.l.b16 %v43
  %v195 = vunpack.c.l.b16 %v44
  %v196 = vunpack.c.l.b16 %v45
  %v197 = vunpack.c.l.b16 %v46
  %v198 = vunpack.c.l.b16 %v47
  %v199 = vunpack.c.l.b16 %v48
  %v200 = vunpack.c.l.b16 %v49
  %v201 = vunpack.c.l.b16 %v50
  %v202 = vunpack.c.l.b16 %v51
  %v203 = vunpack.c.l.b16 %v52
  %v204 = vunpack.c.l.b16 %v53
  %v205 = vunpack.c.l.b16 %v54
  %v206 = vunpack.c.l.b16 %v55
  %v207 = vunpack.c.l.b16 %v56
  %v208 = vunpack.c.l.b16 %v57
  %v209 = vunpack.c.l.b16 %v58
  %v210 = vunpack.c.l.b16 %v59
  %v211 = vunpack.c.l.b16 %v60
  %v212 = vunpack.c.l.b16 %v61
  %v213 = vunpack.c.l.b16 %v62
  %v214 = vpack.c.b16 %v183, %v182
  %v215 = vpack.c.b16 %v185, %v184
  %v216 = vpack.c.b16 %v187, %v186
  %v217 = vpack.c.b16 %v189, %v188
  %v218 = vpack.c.b16 %v191, %v190
  %v219 = vpack.c.b16 %v193, %v192
  %v220 = vpack.c.b16 %v195, %v194
  %v221 = vpack.c.b16 %v197, %v196
  %v222 = vpack.c.b16 %v199, %v198
  %v223 = vpack.c.b16 %v201, %v200
  %v224 = vpack.c.b16 %v203, %v202
  %v225 = vpack.c.b16 %v205, %v204
  %v226 = vpack.c.b16 %v207, %v206
  %v227 = vpack.c.b16 %v209, %v208
  %v228 = vpack.c.b16 %v211, %v210
  %v229 = vpack.c.b16 %v213, %v212
  %246 = vmatprep.subr.bf16.mxu0 0
  %247 = vmatpush1.bf16.msra.mxu0 %v214
  %248 = vmatprep.subr.bf16.mxu0 0
  %249 = vmatpush1.bf16.msra.mxu0 %v215
  %250 = vmatprep.subr.bf16.mxu0 0
  %251 = vmatpush1.bf16.msra.mxu0 %v216
  %252 = vmatprep.subr.bf16.mxu0 0
  %253 = vmatpush1.bf16.msra.mxu0 %v217
  %254 = vmatprep.subr.bf16.mxu0 0
  %255 = vmatpush1.bf16.msra.mxu0 %v218
  %256 = vmatprep.subr.bf16.mxu0 0
  %257 = vmatpush1.bf16.msra.mxu0 %v219
  %258 = vmatprep.subr.bf16.mxu0 0
  %259 = vmatpush1.bf16.msra.mxu0 %v220
  %260 = vmatprep.subr.bf16.mxu0 0
  %261 = vmatpush1.bf16.msra.mxu0 %v221
  %262 = vmatprep.subr.bf16.mxu0 0
  %263 = vmatpush1.bf16.msra.mxu0 %v222
  %264 = vmatprep.subr.bf16.mxu0 0
  %265 = vmatpush1.bf16.msra.mxu0 %v223
  %266 = vmatprep.subr.bf16.mxu0 0
  %267 = vmatpush1.bf16.msra.mxu0 %v224
  %268 = vmatprep.subr.bf16.mxu0 0
  %269 = vmatpush1.bf16.msra.mxu0 %v225
  %270 = vmatprep.subr.bf16.mxu0 0
  %271 = vmatpush1.bf16.msra.mxu0 %v226
  %272 = vmatprep.subr.bf16.mxu0 0
  %273 = vmatpush1.bf16.msra.mxu0 %v227
  %274 = vmatprep.subr.bf16.mxu0 0
  %275 = vmatpush1.bf16.msra.mxu0 %v228
  %276 = vmatprep.subr.bf16.mxu0 0
  %277 = vmatpush1.bf16.msra.mxu0 %v229
  %278 = vmatprep.mubr.bf16.mxu0 %v119
  %279 = vmatmul.mubr.bf16.gmra.mrb[0].mxu0 %v118
  %v280 = vpop.f32.mrb[0].mxu0
  %v281 = vadd.f32 %v68, %v280
  %v282 = vpop.f32.mrb[0].mxu0
  %v283 = vpop.f32.mrb[0].mxu0
  %v284 = vadd.f32 %v68, %v283
  %v285 = vpop.f32.mrb[0].mxu0
  %286 = vmatprep.mubr.bf16.mxu0 %v121
  %287 = vmatmul.mubr.bf16.gmra.mrb[0].mxu0 %v120
  %v288 = vpop.f32.mrb[0].mxu0
  %v289 = vadd.f32 %v68, %v288
  %v290 = vpop.f32.mrb[0].mxu0
  %v291 = vpop.f32.mrb[0].mxu0
  %v292 = vadd.f32 %v68, %v291
  %v293 = vpop.f32.mrb[0].mxu0
  %294 = vmatprep.mubr.bf16.mxu0 %v123
  %295 = vmatmul.mubr.bf16.gmra.mrb[0].mxu0 %v122
  %v296 = vpop.f32.mrb[0].mxu0
  %v297 = vadd.f32 %v68, %v296
  %v298 = vpop.f32.mrb[0].mxu0
  %v299 = vpop.f32.mrb[0].mxu0
  %v300 = vadd.f32 %v68, %v299
  %v301 = vpop.f32.mrb[0].mxu0
  %302 = vmatprep.mubr.bf16.mxu0 %v125
  %303 = vmatmul.mubr.bf16.gmra.mrb[0].mxu0 %v124
  %v304 = vpop.f32.mrb[0].mxu0
  %v305 = vadd.f32 %v68, %v304
  %v306 = vpop.f32.mrb[0].mxu0
  %v307 = vpop.f32.mrb[0].mxu0
  %v308 = vadd.f32 %v68, %v307
  %v309 = vpop.f32.mrb[0].mxu0
  %310 = vmatprep.mubr.bf16.mxu0 %v127
  %311 = vmatmul.mubr.bf16.gmra.mrb[0].mxu0 %v126
  %v312 = vpop.f32.mrb[0].mxu0
  %v313 = vadd.f32 %v68, %v312
  %v314 = vpop.f32.mrb[0].mxu0
  %v315 = vpop.f32.mrb[0].mxu0
  %v316 = vadd.f32 %v68, %v315
  %v317 = vpop.f32.mrb[0].mxu0
  %318 = vmatprep.mubr.bf16.mxu0 %v129
  %319 = vmatmul.mubr.bf16.gmra.mrb[0].mxu0 %v128
  %v320 = vpop.f32.mrb[0].mxu0
  %v321 = vadd.f32 %v68, %v320
  %v322 = vpop.f32.mrb[0].mxu0
  %v323 = vpop.f32.mrb[0].mxu0
  %v324 = vadd.f32 %v68, %v323
  %v325 = vpop.f32.mrb[0].mxu0
  %326 = vmatprep.mubr.bf16.mxu0 %v131
  %327 = vmatmul.mubr.bf16.gmra.mrb[0].mxu0 %v130
  %v328 = vpop.f32.mrb[0].mxu0
  %v329 = vadd.f32 %v68, %v328
  %v330 = vpop.f32.mrb[0].mxu0
  %v331 = vpop.f32.mrb[0].mxu0
  %v332 = vadd.f32 %v68, %v331
  %v333 = vpop.f32.mrb[0].mxu0
  %334 = vmatprep.mubr.bf16.mxu0 %v133
  %335 = vmatmul.mubr.bf16.gmra.mrb[0].mxu0 %v132
  %v336 = vpop.f32.mrb[0].mxu0
  %v337 = vadd.f32 %v68, %v336
  %v338 = vpop.f32.mrb[0].mxu0
  %v339 = vpop.f32.mrb[0].mxu0
  %v340 = vadd.f32 %v68, %v339
  %v341 = vpop.f32.mrb[0].mxu0
  %342 = vdwg.mxu0
  %v343 = vmax.f32 %v281, 0.0
  %v344 = vmax.f32 %v284, 0.0
  %v345 = vmax.f32 %v289, 0.0
  %v346 = vmax.f32 %v292, 0.0
  %v347 = vmax.f32 %v297, 0.0
  %v348 = vmax.f32 %v300, 0.0
  %v349 = vmax.f32 %v305, 0.0
  %v350 = vmax.f32 %v308, 0.0
  %v351 = vmax.f32 %v313, 0.0
  %v352 = vmax.f32 %v316, 0.0
  %v353 = vmax.f32 %v321, 0.0
  %v354 = vmax.f32 %v324, 0.0
  %v355 = vmax.f32 %v329, 0.0
  %v356 = vmax.f32 %v332, 0.0
  %v357 = vmax.f32 %v337, 0.0
  %v358 = vmax.f32 %v340, 0.0
  %v359 = vpack.c.bf16 %v344, %v343
  %v360 = vpack.c.bf16 %v346, %v345
  %v361 = vpack.c.bf16 %v348, %v347
  %v362 = vpack.c.bf16 %v350, %v349
  %v363 = vpack.c.bf16 %v352, %v351
  %v364 = vpack.c.bf16 %v354, %v353
  %v365 = vpack.c.bf16 %v356, %v355
  %v366 = vpack.c.bf16 %v358, %v357
  %v375 = vunpack.c.l.b16 %v359
  %v376 = vunpack.c.h.b16 %v359
  %v377 = vunpack.c.l.b16 %v360
  %v378 = vunpack.c.h.b16 %v360
  %v379 = vunpack.c.l.b16 %v361
  %v380 = vunpack.c.h.b16 %v361
  %v381 = vunpack.c.l.b16 %v362
  %v382 = vunpack.c.h.b16 %v362
  %v383 = vunpack.c.l.b16 %v363
  %v384 = vunpack.c.h.b16 %v363
  %v385 = vunpack.c.l.b16 %v364
  %v386 = vunpack.c.h.b16 %v364
  %v387 = vunpack.c.l.b16 %v365
  %v388 = vunpack.c.h.b16 %v365
  %v389 = vunpack.c.l.b16 %v366
  %v390 = vunpack.c.h.b16 %v366
  %v391 = vpack.c.b16 %v375, %v375
  %v392 = vpack.c.b16 %v376, %v376
  %v393 = vpack.c.b16 %v377, %v377
  %v394 = vpack.c.b16 %v378, %v378
  %v395 = vpack.c.b16 %v379, %v379
  %v396 = vpack.c.b16 %v380, %v380
  %v397 = vpack.c.b16 %v381, %v381
  %v398 = vpack.c.b16 %v382, %v382
  %v399 = vpack.c.b16 %v383, %v383
  %v400 = vpack.c.b16 %v384, %v384
  %v401 = vpack.c.b16 %v385, %v385
  %v402 = vpack.c.b16 %v386, %v386
  %v403 = vpack.c.b16 %v387, %v387
  %v404 = vpack.c.b16 %v388, %v388
  %v405 = vpack.c.b16 %v389, %v389
  %v406 = vpack.c.b16 %v390, %v390
  %vm423 = vcmask 257024
  %424 = vst.msk [vmem:[%s3] sm:$0xf] %vm423, %v391
  %425 = vst.msk [vmem:[%s3 + $0x4] sm:$0xf] %vm423, %v392
  %426 = vst.msk [vmem:[%s3 + $0x8] sm:$0xf] %vm423, %v393
  %427 = vst.msk [vmem:[%s3 + $0xc] sm:$0xf] %vm423, %v394
  %428 = vst.msk [vmem:[%s3 + $0x10] sm:$0xf] %vm423, %v395
  %429 = vst.msk [vmem:[%s3 + $0x14] sm:$0xf] %vm423, %v396
  %430 = vst.msk [vmem:[%s3 + $0x18] sm:$0xf] %vm423, %v397
  %431 = vst.msk [vmem:[%s3 + $0x1c] sm:$0xf] %vm423, %v398
  %432 = vst.msk [vmem:[%s3 + $0x20] sm:$0xf] %vm423, %v399
  %433 = vst.msk [vmem:[%s3 + $0x24] sm:$0xf] %vm423, %v400
  %434 = vst.msk [vmem:[%s3 + $0x28] sm:$0xf] %vm423, %v401
  %435 = vst.msk [vmem:[%s3 + $0x2c] sm:$0xf] %vm423, %v402
  %436 = vst.msk [vmem:[%s3 + $0x30] sm:$0xf] %vm423, %v403
  %437 = vst.msk [vmem:[%s3 + $0x34] sm:$0xf] %vm423, %v404
  %438 = vst.msk [vmem:[%s3 + $0x38] sm:$0xf] %vm423, %v405
  %439 = vst.msk [vmem:[%s3 + $0x3c] sm:$0xf] %vm423, %v406
  // Predicated region
  $region14: #{dueling_dqn_forward.3} parent=0 // pred_check
    _
  $region15: #{dueling_dqn_forward.3} parent=0 // pred_check_branch
    %441 = sbr.rel (0) target = $region17
  $region16: #{dueling_dqn_forward.3} parent=0 // pred_region
    _
  $region17: #{dueling_dqn_forward.3} parent=0 // pred_fallthru
    _
  // Predicated region
  $region18: #{dueling_dqn_forward.3} parent=0 // pred_check
    _
  $region19: #{dueling_dqn_forward.3} parent=0 // pred_check_branch
    %443 = sbr.rel (0) target = $region21
  $region20: #{dueling_dqn_forward.3} parent=0 // pred_region
    _
  $region21: #{dueling_dqn_forward.3} parent=0 // pred_fallthru
    _

// kernel: dueling_dqn_forward.4
$region0: #{dueling_dqn_forward.4}
  #allocation0 [shape = 'u32[]', space=smem, size = 0x4, offset = 0x4, fixed_abs, tag = 'smem constant byte address 0x4 - core index']
  #allocation1 [shape = 'u32[144,128]{1,0:T(1,128)}', space=vmem, size = 0x12000, scoped, tag = 'internal scratch']
  %s0 = inlined_call_operand.vmem [shape: bf16[18,512], index: 0, kind: input, shape index: {}]
  %s1 = inlined_call_operand.vmem [shape: bf16[512,64], index: 1, kind: input, shape index: {}]
  %s2 = inlined_call_operand.vmem [shape: f32[1,64], index: 2, kind: input, shape index: {}]
  %s3 = inlined_call_operand.vmem [shape: bf16[18,64], index: 3, kind: output, shape index: {}]
  %s4 = sld [smem:[#allocation0]]
  $region22: #{dueling_dqn_forward.4} parent=0
    _
  %s6 = ssub.s32 1, %s4
  %s7 = scalar_select 0, %s6, %s4
  // Predicated region
  $region2: #{dueling_dqn_forward.4} parent=0 // pred_check
    _
  $region3: #{dueling_dqn_forward.4} parent=0 // pred_check_branch
    %9 = sbr.rel (0) target = $region5
  $region4: #{dueling_dqn_forward.4} parent=0 // pred_region
    _
  $region5: #{dueling_dqn_forward.4} parent=0 // pred_fallthru
    _
  // Predicated region
  $region6: #{dueling_dqn_forward.4} parent=0 // pred_check
    _
  $region7: #{dueling_dqn_forward.4} parent=0 // pred_check_branch
    %11 = sbr.rel (0) target = $region9
  $region8: #{dueling_dqn_forward.4} parent=0 // pred_region
    _
  $region9: #{dueling_dqn_forward.4} parent=0 // pred_fallthru
    _
  // Predicated region
  $region10: #{dueling_dqn_forward.4} parent=0 // pred_check
    _
  $region11: #{dueling_dqn_forward.4} parent=0 // pred_check_branch
    %13 = sbr.rel (0) target = $region13
  $region12: #{dueling_dqn_forward.4} parent=0 // pred_region
    _
  $region13: #{dueling_dqn_forward.4} parent=0 // pred_fallthru
    _
  %v15 = vld [vmem:[%s0] sm:$0xff]
  %v16 = vld [vmem:[%s0 + $0x8] sm:$0xff]
  %v17 = vld [vmem:[%s0 + $0x10] sm:$0xff]
  %v18 = vld [vmem:[%s0 + $0x18] sm:$0xff]
  %v19 = vld [vmem:[%s0 + $0x20] sm:$0x11]
  %v20 = vld [vmem:[%s0 + $0x28] sm:$0x11]
  %v21 = vld [vmem:[%s1] sm:$0xf]
  %v22 = vld [vmem:[%s1 + $0x4] sm:$0xf]
  %v23 = vld [vmem:[%s1 + $0x8] sm:$0xf]
  %v24 = vld [vmem:[%s1 + $0xc] sm:$0xf]
  %v25 = vld [vmem:[%s1 + $0x10] sm:$0xf]
  %v26 = vld [vmem:[%s1 + $0x14] sm:$0xf]
  %v27 = vld [vmem:[%s1 + $0x18] sm:$0xf]
  %v28 = vld [vmem:[%s1 + $0x1c] sm:$0xf]
  %v29 = vld [vmem:[%s1 + $0x20] sm:$0xf]
  %v30 = vld [vmem:[%s1 + $0x24] sm:$0xf]
  %v31 = vld [vmem:[%s1 + $0x28] sm:$0xf]
  %v32 = vld [vmem:[%s1 + $0x2c] sm:$0xf]
  %v33 = vld [vmem:[%s1 + $0x30] sm:$0xf]
  %v34 = vld [vmem:[%s1 + $0x34] sm:$0xf]
  %v35 = vld [vmem:[%s1 + $0x38] sm:$0xf]
  %v36 = vld [vmem:[%s1 + $0x3c] sm:$0xf]
  %v37 = vld [vmem:[%s1 + $0x40] sm:$0xf]
  %v38 = vld [vmem:[%s1 + $0x44] sm:$0xf]
  %v39 = vld [vmem:[%s1 + $0x48] sm:$0xf]
  %v40 = vld [vmem:[%s1 + $0x4c] sm:$0xf]
  %v41 = vld [vmem:[%s1 + $0x50] sm:$0xf]
  %v42 = vld [vmem:[%s1 + $0x54] sm:$0xf]
  %v43 = vld [vmem:[%s1 + $0x58] sm:$0xf]
  %v44 = vld [vmem:[%s1 + $0x5c] sm:$0xf]
  %v45 = vld [vmem:[%s1 + $0x60] sm:$0xf]
  %v46 = vld [vmem:[%s1 + $0x64] sm:$0xf]
  %v47 = vld [vmem:[%s1 + $0x68] sm:$0xf]
  %v48 = vld [vmem:[%s1 + $0x6c] sm:$0xf]
  %v49 = vld [vmem:[%s1 + $0x70] sm:$0xf]
  %v50 = vld [vmem:[%s1 + $0x74] sm:$0xf]
  %v51 = vld [vmem:[%s1 + $0x78] sm:$0xf]
  %v52 = vld [vmem:[%s1 + $0x7c] sm:$0xf]
  %v53 = vld [vmem:[%s1 + $0x80] sm:$0xf]
  %v54 = vld [vmem:[%s1 + $0x84] sm:$0xf]
  %v55 = vld [vmem:[%s1 + $0x88] sm:$0xf]
  %v56 = vld [vmem:[%s1 + $0x8c] sm:$0xf]
  %v57 = vld [vmem:[%s1 + $0x90] sm:$0xf]
  %v58 = vld [vmem:[%s1 + $0x94] sm:$0xf]
  %v59 = vld [vmem:[%s1 + $0x98] sm:$0xf]
  %v60 = vld [vmem:[%s1 + $0x9c] sm:$0xf]
  %v61 = vld [vmem:[%s1 + $0xa0] sm:$0xf]
  %v62 = vld [vmem:[%s1 + $0xa4] sm:$0xf]
  %v63 = vld [vmem:[%s1 + $0xa8] sm:$0xf]
  %v64 = vld [vmem:[%s1 + $0xac] sm:$0xf]
  %v65 = vld [vmem:[%s1 + $0xb0] sm:$0xf]
  %v66 = vld [vmem:[%s1 + $0xb4] sm:$0xf]
  %v67 = vld [vmem:[%s1 + $0xb8] sm:$0xf]
  %v68 = vld [vmem:[%s1 + $0xbc] sm:$0xf]
  %v69 = vld [vmem:[%s1 + $0xc0] sm:$0xf]
  %v70 = vld [vmem:[%s1 + $0xc4] sm:$0xf]
  %v71 = vld [vmem:[%s1 + $0xc8] sm:$0xf]
  %v72 = vld [vmem:[%s1 + $0xcc] sm:$0xf]
  %v73 = vld [vmem:[%s1 + $0xd0] sm:$0xf]
  %v74 = vld [vmem:[%s1 + $0xd4] sm:$0xf]
  %v75 = vld [vmem:[%s1 + $0xd8] sm:$0xf]
  %v76 = vld [vmem:[%s1 + $0xdc] sm:$0xf]
  %v77 = vld [vmem:[%s1 + $0xe0] sm:$0xf]
  %v78 = vld [vmem:[%s1 + $0xe4] sm:$0xf]
  %v79 = vld [vmem:[%s1 + $0xe8] sm:$0xf]
  %v80 = vld [vmem:[%s1 + $0xec] sm:$0xf]
  %v81 = vld [vmem:[%s1 + $0xf0] sm:$0xf]
  %v82 = vld [vmem:[%s1 + $0xf4] sm:$0xf]
  %v83 = vld [vmem:[%s1 + $0xf8] sm:$0xf]
  %v84 = vld [vmem:[%s1 + $0xfc] sm:$0xf]
  %v85 = vld [vmem:[%s2] sm:$0x1]
  %v87 = vlaneseq
  %v88 = vshrl.u32 %v87, 7
  %v89 = vsub.s32 0, %v88
  %v90 = vrot.slane %v85, %v89
  %v98 = vunpack.c.l.b16 %v15
  %v99 = vunpack.c.h.b16 %v15
  %v100 = vunpack.c.l.b16 %v16
  %v101 = vunpack.c.h.b16 %v16
  %v102 = vunpack.c.l.b16 %v17
  %v103 = vunpack.c.h.b16 %v17
  %v104 = vunpack.c.l.b16 %v18
  %v105 = vunpack.c.h.b16 %v18
  %v106 = vunpack.c.l.b16 %v19
  %v107 = vunpack.c.h.b16 %v19
  %v108 = vunpack.c.l.b16 %v20
  %v109 = vunpack.c.h.b16 %v20
  %v110 = vpack.c.b16 %v102, %v98
  %v111 = vpack.c.b16 %v103, %v99
  %v112 = vpack.c.b16 %v104, %v100
  %v113 = vpack.c.b16 %v105, %v101
  %v114 = vpack.c.b16 %v106, %v106
  %v115 = vpack.c.b16 %v107, %v107
  %v116 = vpack.c.b16 %v108, %v108
  %v117 = vpack.c.b16 %v109, %v109
  %v190 = vunpack.c.l.b16 %v21
  %v191 = vunpack.c.l.b16 %v22
  %v192 = vunpack.c.l.b16 %v23
  %v193 = vunpack.c.l.b16 %v24
  %v194 = vunpack.c.l.b16 %v25
  %v195 = vunpack.c.l.b16 %v26
  %v196 = vunpack.c.l.b16 %v27
  %v197 = vunpack.c.l.b16 %v28
  %v198 = vunpack.c.l.b16 %v29
  %v199 = vunpack.c.l.b16 %v30
  %v200 = vunpack.c.l.b16 %v31
  %v201 = vunpack.c.l.b16 %v32
  %v202 = vunpack.c.l.b16 %v33
  %v203 = vunpack.c.l.b16 %v34
  %v204 = vunpack.c.l.b16 %v35
  %v205 = vunpack.c.l.b16 %v36
  %v206 = vunpack.c.l.b16 %v37
  %v207 = vunpack.c.l.b16 %v38
  %v208 = vunpack.c.l.b16 %v39
  %v209 = vunpack.c.l.b16 %v40
  %v210 = vunpack.c.l.b16 %v41
  %v211 = vunpack.c.l.b16 %v42
  %v212 = vunpack.c.l.b16 %v43
  %v213 = vunpack.c.l.b16 %v44
  %v214 = vunpack.c.l.b16 %v45
  %v215 = vunpack.c.l.b16 %v46
  %v216 = vunpack.c.l.b16 %v47
  %v217 = vunpack.c.l.b16 %v48
  %v218 = vunpack.c.l.b16 %v49
  %v219 = vunpack.c.l.b16 %v50
  %v220 = vunpack.c.l.b16 %v51
  %v221 = vunpack.c.l.b16 %v52
  %v222 = vunpack.c.l.b16 %v53
  %v223 = vunpack.c.l.b16 %v54
  %v224 = vunpack.c.l.b16 %v55
  %v225 = vunpack.c.l.b16 %v56
  %v226 = vunpack.c.l.b16 %v57
  %v227 = vunpack.c.l.b16 %v58
  %v228 = vunpack.c.l.b16 %v59
  %v229 = vunpack.c.l.b16 %v60
  %v230 = vunpack.c.l.b16 %v61
  %v231 = vunpack.c.l.b16 %v62
  %v232 = vunpack.c.l.b16 %v63
  %v233 = vunpack.c.l.b16 %v64
  %v234 = vunpack.c.l.b16 %v65
  %v235 = vunpack.c.l.b16 %v66
  %v236 = vunpack.c.l.b16 %v67
  %v237 = vunpack.c.l.b16 %v68
  %v238 = vunpack.c.l.b16 %v69
  %v239 = vunpack.c.l.b16 %v70
  %v240 = vunpack.c.l.b16 %v71
  %v241 = vunpack.c.l.b16 %v72
  %v242 = vunpack.c.l.b16 %v73
  %v243 = vunpack.c.l.b16 %v74
  %v244 = vunpack.c.l.b16 %v75
  %v245 = vunpack.c.l.b16 %v76
  %v246 = vunpack.c.l.b16 %v77
  %v247 = vunpack.c.l.b16 %v78
  %v248 = vunpack.c.l.b16 %v79
  %v249 = vunpack.c.l.b16 %v80
  %v250 = vunpack.c.l.b16 %v81
  %v251 = vunpack.c.l.b16 %v82
  %v252 = vunpack.c.l.b16 %v83
  %v253 = vunpack.c.l.b16 %v84
  %v254 = vpack.c.b16 %v191, %v190
  %v255 = vpack.c.b16 %v193, %v192
  %v256 = vpack.c.b16 %v195, %v194
  %v257 = vpack.c.b16 %v197, %v196
  %v258 = vpack.c.b16 %v199, %v198
  %v259 = vpack.c.b16 %v201, %v200
  %v260 = vpack.c.b16 %v203, %v202
  %v261 = vpack.c.b16 %v205, %v204
  %v262 = vpack.c.b16 %v207, %v206
  %v263 = vpack.c.b16 %v209, %v208
  %v264 = vpack.c.b16 %v211, %v210
  %v265 = vpack.c.b16 %v213, %v212
  %v266 = vpack.c.b16 %v215, %v214
  %v267 = vpack.c.b16 %v217, %v216
  %v268 = vpack.c.b16 %v219, %v218
  %v269 = vpack.c.b16 %v221, %v220
  %v270 = vpack.c.b16 %v223, %v222
  %v271 = vpack.c.b16 %v225, %v224
  %v272 = vpack.c.b16 %v227, %v226
  %v273 = vpack.c.b16 %v229, %v228
  %v274 = vpack.c.b16 %v231, %v230
  %v275 = vpack.c.b16 %v233, %v232
  %v276 = vpack.c.b16 %v235, %v234
  %v277 = vpack.c.b16 %v237, %v236
  %v278 = vpack.c.b16 %v239, %v238
  %v279 = vpack.c.b16 %v241, %v240
  %v280 = vpack.c.b16 %v243, %v242
  %v281 = vpack.c.b16 %v245, %v244
  %v282 = vpack.c.b16 %v247, %v246
  %v283 = vpack.c.b16 %v249, %v248
  %v284 = vpack.c.b16 %v251, %v250
  %v285 = vpack.c.b16 %v253, %v252
  %318 = vmatprep.subr.bf16.mxu0 0
  %319 = vmatpush1.bf16.msra.mxu0 %v254
  %320 = vmatprep.subr.bf16.mxu0 0
  %321 = vmatpush1.bf16.msra.mxu0 %v255
  %322 = vmatprep.subr.bf16.mxu0 0
  %323 = vmatpush1.bf16.msra.mxu0 %v256
  %324 = vmatprep.subr.bf16.mxu0 0
  %325 = vmatpush1.bf16.msra.mxu0 %v257
  %326 = vmatprep.subr.bf16.mxu0 0
  %327 = vmatpush1.bf16.msra.mxu0 %v258
  %328 = vmatprep.subr.bf16.mxu0 0
  %329 = vmatpush1.bf16.msra.mxu0 %v259
  %330 = vmatprep.subr.bf16.mxu0 0
  %331 = vmatpush1.bf16.msra.mxu0 %v260
  %332 = vmatprep.subr.bf16.mxu0 0
  %333 = vmatpush1.bf16.msra.mxu0 %v261
  %334 = vmatprep.subr.bf16.mxu0 0
  %335 = vmatpush1.bf16.msra.mxu0 %v262
  %336 = vmatprep.subr.bf16.mxu0 0
  %337 = vmatpush1.bf16.msra.mxu0 %v263
  %338 = vmatprep.subr.bf16.mxu0 0
  %339 = vmatpush1.bf16.msra.mxu0 %v264
  %340 = vmatprep.subr.bf16.mxu0 0
  %341 = vmatpush1.bf16.msra.mxu0 %v265
  %342 = vmatprep.subr.bf16.mxu0 0
  %343 = vmatpush1.bf16.msra.mxu0 %v266
  %344 = vmatprep.subr.bf16.mxu0 0
  %345 = vmatpush1.bf16.msra.mxu0 %v267
  %346 = vmatprep.subr.bf16.mxu0 0
  %347 = vmatpush1.bf16.msra.mxu0 %v268
  %348 = vmatprep.subr.bf16.mxu0 0
  %349 = vmatpush1.bf16.msra.mxu0 %v269
  %350 = vmatprep.mubr.bf16.mxu0 %v111
  %351 = vmatmul.mubr.bf16.gmra.mrb[0].mxu0 %v110
  %v352 = vpop.f32.mrb[0].mxu0
  %v353 = vadd.f32 %v90, %v352
  %v354 = vpop.f32.mrb[0].mxu0
  %v355 = vpop.f32.mrb[0].mxu0
  %v356 = vadd.f32 %v90, %v355
  %v357 = vpop.f32.mrb[0].mxu0
  %358 = vmatprep.mubr.bf16.mxu0 %v115
  %359 = vmatmul.mubr.bf16.gmra.mrb[0].mxu0 %v114
  %v360 = vpop.f32.mrb[0].mxu0
  %v361 = vadd.f32 %v90, %v360
  %v362 = vpop.f32.mrb[0].mxu0
  %v363 = vpop.f32.mrb[0].mxu0
  %v364 = vpop.f32.mrb[0].mxu0
  %365 = vdwg.mxu0
  %366 = vmatprep.subr.bf16.mxu0 0
  %367 = vmatpush1.bf16.msra.mxu0 %v270
  %368 = vmatprep.subr.bf16.mxu0 0
  %369 = vmatpush1.bf16.msra.mxu0 %v271
  %370 = vmatprep.subr.bf16.mxu0 0
  %371 = vmatpush1.bf16.msra.mxu0 %v272
  %372 = vmatprep.subr.bf16.mxu0 0
  %373 = vmatpush1.bf16.msra.mxu0 %v273
  %374 = vmatprep.subr.bf16.mxu0 0
  %375 = vmatpush1.bf16.msra.mxu0 %v274
  %376 = vmatprep.subr.bf16.mxu0 0
  %377 = vmatpush1.bf16.msra.mxu0 %v275
  %378 = vmatprep.subr.bf16.mxu0 0
  %379 = vmatpush1.bf16.msra.mxu0 %v276
  %380 = vmatprep.subr.bf16.mxu0 0
  %381 = vmatpush1.bf16.msra.mxu0 %v277
  %382 = vmatprep.subr.bf16.mxu0 0
  %383 = vmatpush1.bf16.msra.mxu0 %v278
  %384 = vmatprep.subr.bf16.mxu0 0
  %385 = vmatpush1.bf16.msra.mxu0 %v279
  %386 = vmatprep.subr.bf16.mxu0 0
  %387 = vmatpush1.bf16.msra.mxu0 %v280
  %388 = vmatprep.subr.bf16.mxu0 0
  %389 = vmatpush1.bf16.msra.mxu0 %v281
  %390 = vmatprep.subr.bf16.mxu0 0
  %391 = vmatpush1.bf16.msra.mxu0 %v282
  %392 = vmatprep.subr.bf16.mxu0 0
  %393 = vmatpush1.bf16.msra.mxu0 %v283
  %394 = vmatprep.subr.bf16.mxu0 0
  %395 = vmatpush1.bf16.msra.mxu0 %v284
  %396 = vmatprep.subr.bf16.mxu0 0
  %397 = vmatpush1.bf16.msra.mxu0 %v285
  %398 = vmatprep.mubr.bf16.mxu0 %v113
  %399 = vmatmul.mubr.bf16.gmra.mrb[0].mxu0 %v112
  %v400 = vpop.f32.mrb[0].mxu0
  %v401 = vadd.f32 %v353, %v400
  %v402 = vpop.f32.mrb[0].mxu0
  %v403 = vpop.f32.mrb[0].mxu0
  %v404 = vadd.f32 %v356, %v403
  %v405 = vpop.f32.mrb[0].mxu0
  %406 = vmatprep.mubr.bf16.mxu0 %v117
  %407 = vmatmul.mubr.bf16.gmra.mrb[0].mxu0 %v116
  %v408 = vpop.f32.mrb[0].mxu0
  %v409 = vadd.f32 %v361, %v408
  %v410 = vpop.f32.mrb[0].mxu0
  %v411 = vpop.f32.mrb[0].mxu0
  %v412 = vpop.f32.mrb[0].mxu0
  %413 = vdwg.mxu0
  %v414 = vmax.f32 %v401, 0.0
  %v415 = vmax.f32 %v404, 0.0
  %v416 = vmax.f32 %v409, 0.0
  %v417 = vpack.c.bf16 %v415, %v414
  %v418 = vpack.c.bf16 %v416, %v416
  %v421 = vunpack.c.l.b16 %v417
  %v422 = vunpack.c.h.b16 %v417
  %v423 = vunpack.c.l.b16 %v418
  %v424 = vpack.c.b16 %v421, %v421
  %v425 = vpack.c.b16 %v422, %v422
  %v426 = vpack.c.b16 %v423, %v423
  %vm430 = vcmask 519168
  %431 = vst.msk [vmem:[%s3] sm:$0xf] %vm430, %v424
  %432 = vst.msk [vmem:[%s3 + $0x4] sm:$0xf] %vm430, %v425
  %vm433 = vcmask 516096
  %434 = vst.msk [vmem:[%s3 + $0x8] sm:$0x1] %vm433, %v426
  // Predicated region
  $region14: #{dueling_dqn_forward.4} parent=0 // pred_check
    _
  $region15: #{dueling_dqn_forward.4} parent=0 // pred_check_branch
    %436 = sbr.rel (0) target = $region17
  $region16: #{dueling_dqn_forward.4} parent=0 // pred_region
    _
  $region17: #{dueling_dqn_forward.4} parent=0 // pred_fallthru
    _
  // Predicated region
  $region18: #{dueling_dqn_forward.4} parent=0 // pred_check
    _
  $region19: #{dueling_dqn_forward.4} parent=0 // pred_check_branch
    %438 = sbr.rel (0) target = $region21
  $region20: #{dueling_dqn_forward.4} parent=0 // pred_region
    _
  $region21: #{dueling_dqn_forward.4} parent=0 // pred_fallthru
    _

// kernel: dueling_dqn_forward.5
$region0: #{dueling_dqn_forward.5}
  #allocation0 [shape = 'u32[]', space=smem, size = 0x4, offset = 0x4, fixed_abs, tag = 'smem constant byte address 0x4 - core index']
  #allocation1 [shape = 'u32[144,128]{1,0:T(1,128)}', space=vmem, size = 0x12000, scoped, tag = 'internal scratch']
  %s0 = inlined_call_operand.vmem [shape: bf16[2,576], index: 0, kind: input, shape index: {}]
  %s1 = inlined_call_operand.vmem [shape: bf16[576,64], index: 1, kind: input, shape index: {}]
  %s2 = inlined_call_operand.vmem [shape: f32[1,64], index: 2, kind: input, shape index: {}]
  %s3 = inlined_call_operand.vmem [shape: bf16[64,1024], index: 3, kind: input, shape index: {}]
  %s4 = inlined_call_operand.vmem [shape: f32[1,1024], index: 4, kind: input, shape index: {}]
  %s5 = inlined_call_operand.vmem [shape: bf16[1024,7], index: 5, kind: input, shape index: {}]
  %s6 = inlined_call_operand.vmem [shape: f32[1,7], index: 6, kind: input, shape index: {}]
  %s7 = inlined_call_operand.hbm [shape: f32[2,6], index: 7, kind: output, shape index: {}]
  %s8 = sld [smem:[#allocation0]]
  $region38: #{dueling_dqn_forward.5} parent=0
    _
  %s10 = ssub.s32 1, %s8
  %s11 = scalar_select 0, %s10, %s8
  $region1: #{dueling_dqn_forward.5} parent=0
    #allocation2 [shape = 'u8[1024]{0}', space=vmem, size = 0x400, scoped, tag = 'output window, operand 0, single buffered']
    #allocation3 [shape = 's32[1]{0}', space=sflag, size = 0x4, scoped, tag = 'scoped memory for dueling_dqn_forward.5']
    %12 = vsyncpa [#allocation3], 0
    // Predicated region
    $region2: #{dueling_dqn_forward.5} parent=1 // pred_check
      _
    $region3: #{dueling_dqn_forward.5} parent=1 // pred_check_branch
      %14 = sbr.rel (0) target = $region5
    $region4: #{dueling_dqn_forward.5} parent=1 // pred_region
      _
    $region5: #{dueling_dqn_forward.5} parent=1 // pred_fallthru
      _
    // Predicated region
    $region6: #{dueling_dqn_forward.5} parent=1 // pred_check
      _
    $region7: #{dueling_dqn_forward.5} parent=1 // pred_check_branch
      %16 = sbr.rel (0) target = $region9
    $region8: #{dueling_dqn_forward.5} parent=1 // pred_region
      _
    $region9: #{dueling_dqn_forward.5} parent=1 // pred_fallthru
      _
    // Predicated region
    $region10: #{dueling_dqn_forward.5} parent=1 // pred_check
      _
    $region11: #{dueling_dqn_forward.5} parent=1 // pred_check_branch
      %18 = sbr.rel (0) target = $region13
    $region12: #{dueling_dqn_forward.5} parent=1 // pred_region
      _
    $region13: #{dueling_dqn_forward.5} parent=1 // pred_fallthru
      _
    // Predicated region
    $region14: #{dueling_dqn_forward.5} parent=1 // pred_check
      _
    $region15: #{dueling_dqn_forward.5} parent=1 // pred_check_branch
      %20 = sbr.rel (0) target = $region17
    $region16: #{dueling_dqn_forward.5} parent=1 // pred_region
      _
    $region17: #{dueling_dqn_forward.5} parent=1 // pred_fallthru
      _
    // Predicated region
    $region18: #{dueling_dqn_forward.5} parent=1 // pred_check
      _
    $region19: #{dueling_dqn_forward.5} parent=1 // pred_check_branch
      %22 = sbr.rel (0) target = $region21
    $region20: #{dueling_dqn_forward.5} parent=1 // pred_region
      _
    $region21: #{dueling_dqn_forward.5} parent=1 // pred_fallthru
      _
    // Predicated region
    $region22: #{dueling_dqn_forward.5} parent=1 // pred_check
      _
    $region23: #{dueling_dqn_forward.5} parent=1 // pred_check_branch
      %24 = sbr.rel (0) target = $region25
    $region24: #{dueling_dqn_forward.5} parent=1 // pred_region
      _
    $region25: #{dueling_dqn_forward.5} parent=1 // pred_fallthru
      _
    // Predicated region
    $region26: #{dueling_dqn_forward.5} parent=1 // pred_check
      _
    $region27: #{dueling_dqn_forward.5} parent=1 // pred_check_branch
      %26 = sbr.rel (0) target = $region29
    $region28: #{dueling_dqn_forward.5} parent=1 // pred_region
      _
    $region29: #{dueling_dqn_forward.5} parent=1 // pred_fallthru
      _
    %v28 = vld [vmem:[%s0] sm:$0x1f]
    %v29 = vld [vmem:[%s1] sm:$0xf]
    %v30 = vld [vmem:[%s1 + $0x4] sm:$0xf]
    %v31 = vld [vmem:[%s1 + $0x8] sm:$0xf]
    %v32 = vld [vmem:[%s1 + $0xc] sm:$0xf]
    %v33 = vld [vmem:[%s1 + $0x10] sm:$0xf]
    %v34 = vld [vmem:[%s1 + $0x14] sm:$0xf]
    %v35 = vld [vmem:[%s1 + $0x18] sm:$0xf]
    %v36 = vld [vmem:[%s1 + $0x1c] sm:$0xf]
    %v37 = vld [vmem:[%s1 + $0x20] sm:$0xf]
    %v38 = vld [vmem:[%s1 + $0x24] sm:$0xf]
    %v39 = vld [vmem:[%s1 + $0x28] sm:$0xf]
    %v40 = vld [vmem:[%s1 + $0x2c] sm:$0xf]
    %v41 = vld [vmem:[%s1 + $0x30] sm:$0xf]
    %v42 = vld [vmem:[%s1 + $0x34] sm:$0xf]
    %v43 = vld [vmem:[%s1 + $0x38] sm:$0xf]
    %v44 = vld [vmem:[%s1 + $0x3c] sm:$0xf]
    %v45 = vld [vmem:[%s1 + $0x40] sm:$0xf]
    %v46 = vld [vmem:[%s1 + $0x44] sm:$0xf]
    %v47 = vld [vmem:[%s1 + $0x48] sm:$0xf]
    %v48 = vld [vmem:[%s1 + $0x4c] sm:$0xf]
    %v49 = vld [vmem:[%s1 + $0x50] sm:$0xf]
    %v50 = vld [vmem:[%s1 + $0x54] sm:$0xf]
    %v51 = vld [vmem:[%s1 + $0x58] sm:$0xf]
    %v52 = vld [vmem:[%s1 + $0x5c] sm:$0xf]
    %v53 = vld [vmem:[%s1 + $0x60] sm:$0xf]
    %v54 = vld [vmem:[%s1 + $0x64] sm:$0xf]
    %v55 = vld [vmem:[%s1 + $0x68] sm:$0xf]
    %v56 = vld [vmem:[%s1 + $0x6c] sm:$0xf]
    %v57 = vld [vmem:[%s1 + $0x70] sm:$0xf]
    %v58 = vld [vmem:[%s1 + $0x74] sm:$0xf]
    %v59 = vld [vmem:[%s1 + $0x78] sm:$0xf]
    %v60 = vld [vmem:[%s1 + $0x7c] sm:$0xf]
    %v61 = vld [vmem:[%s1 + $0x80] sm:$0xf]
    %v62 = vld [vmem:[%s1 + $0x84] sm:$0xf]
    %v63 = vld [vmem:[%s1 + $0x88] sm:$0xf]
    %v64 = vld [vmem:[%s1 + $0x8c] sm:$0xf]
    %v65 = vld [vmem:[%s1 + $0x90] sm:$0xf]
    %v66 = vld [vmem:[%s1 + $0x94] sm:$0xf]
    %v67 = vld [vmem:[%s1 + $0x98] sm:$0xf]
    %v68 = vld [vmem:[%s1 + $0x9c] sm:$0xf]
    %v69 = vld [vmem:[%s1 + $0xa0] sm:$0xf]
    %v70 = vld [vmem:[%s1 + $0xa4] sm:$0xf]
    %v71 = vld [vmem:[%s1 + $0xa8] sm:$0xf]
    %v72 = vld [vmem:[%s1 + $0xac] sm:$0xf]
    %v73 = vld [vmem:[%s1 + $0xb0] sm:$0xf]
    %v74 = vld [vmem:[%s1 + $0xb4] sm:$0xf]
    %v75 = vld [vmem:[%s1 + $0xb8] sm:$0xf]
    %v76 = vld [vmem:[%s1 + $0xbc] sm:$0xf]
    %v77 = vld [vmem:[%s1 + $0xc0] sm:$0xf]
    %v78 = vld [vmem:[%s1 + $0xc4] sm:$0xf]
    %v79 = vld [vmem:[%s1 + $0xc8] sm:$0xf]
    %v80 = vld [vmem:[%s1 + $0xcc] sm:$0xf]
    %v81 = vld [vmem:[%s1 + $0xd0] sm:$0xf]
    %v82 = vld [vmem:[%s1 + $0xd4] sm:$0xf]
    %v83 = vld [vmem:[%s1 + $0xd8] sm:$0xf]
    %v84 = vld [vmem:[%s1 + $0xdc] sm:$0xf]
    %v85 = vld [vmem:[%s1 + $0xe0] sm:$0xf]
    %v86 = vld [vmem:[%s1 + $0xe4] sm:$0xf]
    %v87 = vld [vmem:[%s1 + $0xe8] sm:$0xf]
    %v88 = vld [vmem:[%s1 + $0xec] sm:$0xf]
    %v89 = vld [vmem:[%s1 + $0xf0] sm:$0xf]
    %v90 = vld [vmem:[%s1 + $0xf4] sm:$0xf]
    %v91 = vld [vmem:[%s1 + $0xf8] sm:$0xf]
    %v92 = vld [vmem:[%s1 + $0xfc] sm:$0xf]
    %v93 = vld [vmem:[%s1 + $0x100] sm:$0xf]
    %v94 = vld [vmem:[%s1 + $0x104] sm:$0xf]
    %v95 = vld [vmem:[%s1 + $0x108] sm:$0xf]
    %v96 = vld [vmem:[%s1 + $0x10c] sm:$0xf]
    %v97 = vld [vmem:[%s1 + $0x110] sm:$0xf]
    %v98 = vld [vmem:[%s1 + $0x114] sm:$0xf]
    %v99 = vld [vmem:[%s1 + $0x118] sm:$0xf]
    %v100 = vld [vmem:[%s1 + $0x11c] sm:$0xf]
    %v101 = vld [vmem:[%s2] sm:$0x1]
    %v103 = vlaneseq
    %v104 = vshrl.u32 %v103, 7
    %v105 = vsub.s32 0, %v104
    %v106 = vrot.slane %v101, %v105
    %v109 = vcombine.high %v28, %v28
    %v111 = vunpack.c.l.s4 1966171168
    %v112 = vunpack.c.0.s8 %v111
    %v113 = vlaneseq
    %v114 = vshrl.u32 %v113, 7
    %v115 = vsub.s32 %v112, %v114
    %v116 = vrot.slane %v28, %v115
    %v118 = vunpack.c.l.s4 1966171168
    %v119 = vunpack.c.0.s8 %v118
    %v120 = vlaneseq
    %v121 = vshrl.u32 %v120, 7
    %v122 = vsub.s32 %v119, %v121
    %v123 = vrot.slane %v109, %v122
    %v124 = vcombine.high %v116, %v116
    %v126 = vunpack.c.l.s4 1966171168
    %v127 = vunpack.c.0.s8 %v126
    %v128 = vlaneseq
    %v129 = vshrl.u32 %v128, 7
    %v130 = vsub.s32 %v127, %v129
    %v131 = vrot.slane %v116, %v130
    %v133 = vunpack.c.l.s4 1966171168
    %v134 = vunpack.c.0.s8 %v133
    %v135 = vlaneseq
    %v136 = vshrl.u32 %v135, 7
    %v137 = vsub.s32 %v134, %v136
    %v138 = vrot.slane %v123, %v137
    %v140 = vunpack.c.l.s4 1966171168
    %v141 = vunpack.c.0.s8 %v140
    %v142 = vlaneseq
    %v143 = vshrl.u32 %v142, 7
    %v144 = vsub.s32 %v141, %v143
    %v145 = vrot.slane %v124, %v144
    %v146 = vcombine.high %v131, %v131
    %v147 = vcombine.high %v145, %v145
    %v224 = vunpack.c.l.b16 %v29
    %v225 = vunpack.c.l.b16 %v30
    %v226 = vunpack.c.l.b16 %v31
    %v227 = vunpack.c.l.b16 %v32
    %v228 = vunpack.c.l.b16 %v33
    %v229 = vunpack.c.l.b16 %v34
    %v230 = vunpack.c.l.b16 %v35
    %v231 = vunpack.c.l.b16 %v36
    %v232 = vunpack.c.l.b16 %v37
    %v233 = vunpack.c.l.b16 %v38
    %v234 = vunpack.c.l.b16 %v39
    %v235 = vunpack.c.l.b16 %v40
    %v236 = vunpack.c.l.b16 %v41
    %v237 = vunpack.c.l.b16 %v42
    %v238 = vunpack.c.l.b16 %v43
    %v239 = vunpack.c.l.b16 %v44
    %v240 = vunpack.c.l.b16 %v45
    %v241 = vunpack.c.l.b16 %v46
    %v242 = vunpack.c.l.b16 %v47
    %v243 = vunpack.c.l.b16 %v48
    %v244 = vunpack.c.l.b16 %v49
    %v245 = vunpack.c.l.b16 %v50
    %v246 = vunpack.c.l.b16 %v51
    %v247 = vunpack.c.l.b16 %v52
    %v248 = vunpack.c.l.b16 %v53
    %v249 = vunpack.c.l.b16 %v54
    %v250 = vunpack.c.l.b16 %v55
    %v251 = vunpack.c.l.b16 %v56
    %v252 = vunpack.c.l.b16 %v57
    %v253 = vunpack.c.l.b16 %v58
    %v254 = vunpack.c.l.b16 %v59
    %v255 = vunpack.c.l.b16 %v60
    %v256 = vunpack.c.l.b16 %v61
    %v257 = vunpack.c.l.b16 %v62
    %v258 = vunpack.c.l.b16 %v63
    %v259 = vunpack.c.l.b16 %v64
    %v260 = vunpack.c.l.b16 %v65
    %v261 = vunpack.c.l.b16 %v66
    %v262 = vunpack.c.l.b16 %v67
    %v263 = vunpack.c.l.b16 %v68
    %v264 = vunpack.c.l.b16 %v69
    %v265 = vunpack.c.l.b16 %v70
    %v266 = vunpack.c.l.b16 %v71
    %v267 = vunpack.c.l.b16 %v72
    %v268 = vunpack.c.l.b16 %v73
    %v269 = vunpack.c.l.b16 %v74
    %v270 = vunpack.c.l.b16 %v75
    %v271 = vunpack.c.l.b16 %v76
    %v272 = vunpack.c.l.b16 %v77
    %v273 = vunpack.c.l.b16 %v78
    %v274 = vunpack.c.l.b16 %v79
    %v275 = vunpack.c.l.b16 %v80
    %v276 = vunpack.c.l.b16 %v81
    %v277 = vunpack.c.l.b16 %v82
    %v278 = vunpack.c.l.b16 %v83
    %v279 = vunpack.c.l.b16 %v84
    %v280 = vunpack.c.l.b16 %v85
    %v281 = vunpack.c.l.b16 %v86
    %v282 = vunpack.c.l.b16 %v87
    %v283 = vunpack.c.l.b16 %v88
    %v284 = vunpack.c.l.b16 %v89
    %v285 = vunpack.c.l.b16 %v90
    %v286 = vunpack.c.l.b16 %v91
    %v287 = vunpack.c.l.b16 %v92
    %v288 = vunpack.c.l.b16 %v93
    %v289 = vunpack.c.l.b16 %v94
    %v290 = vunpack.c.l.b16 %v95
    %v291 = vunpack.c.l.b16 %v96
    %v292 = vunpack.c.l.b16 %v97
    %v293 = vunpack.c.l.b16 %v98
    %v294 = vunpack.c.l.b16 %v99
    %v295 = vunpack.c.l.b16 %v100
    %v296 = vpack.c.b16 %v225, %v224
    %v297 = vpack.c.b16 %v227, %v226
    %v298 = vpack.c.b16 %v229, %v228
    %v299 = vpack.c.b16 %v231, %v230
    %v300 = vpack.c.b16 %v233, %v232
    %v301 = vpack.c.b16 %v235, %v234
    %v302 = vpack.c.b16 %v237, %v236
    %v303 = vpack.c.b16 %v239, %v238
    %v304 = vpack.c.b16 %v241, %v240
    %v305 = vpack.c.b16 %v243, %v242
    %v306 = vpack.c.b16 %v245, %v244
    %v307 = vpack.c.b16 %v247, %v246
    %v308 = vpack.c.b16 %v249, %v248
    %v309 = vpack.c.b16 %v251, %v250
    %v310 = vpack.c.b16 %v253, %v252
    %v311 = vpack.c.b16 %v255, %v254
    %v312 = vpack.c.b16 %v257, %v256
    %v313 = vpack.c.b16 %v259, %v258
    %v314 = vpack.c.b16 %v261, %v260
    %v315 = vpack.c.b16 %v263, %v262
    %v316 = vpack.c.b16 %v265, %v264
    %v317 = vpack.c.b16 %v267, %v266
    %v318 = vpack.c.b16 %v269, %v268
    %v319 = vpack.c.b16 %v271, %v270
    %v320 = vpack.c.b16 %v273, %v272
    %v321 = vpack.c.b16 %v275, %v274
    %v322 = vpack.c.b16 %v277, %v276
    %v323 = vpack.c.b16 %v279, %v278
    %v324 = vpack.c.b16 %v281, %v280
    %v325 = vpack.c.b16 %v283, %v282
    %v326 = vpack.c.b16 %v285, %v284
    %v327 = vpack.c.b16 %v287, %v286
    %v328 = vpack.c.b16 %v289, %v288
    %v329 = vpack.c.b16 %v291, %v290
    %v330 = vpack.c.b16 %v293, %v292
    %v331 = vpack.c.b16 %v295, %v294
    %vm368 = vcmask 523264
    %v370 = vsel %vm368, %v138, 0
    %372 = vmatprep.subr.bf16.mxu0 0
    %373 = vmatpush1.bf16.msra.mxu0 %v296
    %374 = vmatprep.subr.bf16.mxu0 0
    %375 = vmatpush1.bf16.msra.mxu0 %v297
    %376 = vmatprep.subr.bf16.mxu0 0
    %377 = vmatpush1.bf16.msra.mxu0 %v298
    %378 = vmatprep.subr.bf16.mxu0 0
    %379 = vmatpush1.bf16.msra.mxu0 %v299
    %380 = vmatprep.subr.bf16.mxu0 0
    %381 = vmatpush1.bf16.msra.mxu0 %v300
    %382 = vmatprep.subr.bf16.mxu0 0
    %383 = vmatpush1.bf16.msra.mxu0 %v301
    %384 = vmatprep.subr.bf16.mxu0 0
    %385 = vmatpush1.bf16.msra.mxu0 %v302
    %386 = vmatprep.subr.bf16.mxu0 0
    %387 = vmatpush1.bf16.msra.mxu0 %v303
    %388 = vmatprep.subr.bf16.mxu0 0
    %389 = vmatpush1.bf16.msra.mxu0 %v304
    %390 = vmatprep.subr.bf16.mxu0 0
    %391 = vmatpush1.bf16.msra.mxu0 %v305
    %392 = vmatprep.subr.bf16.mxu0 0
    %393 = vmatpush1.bf16.msra.mxu0 %v306
    %394 = vmatprep.subr.bf16.mxu0 0
    %395 = vmatpush1.bf16.msra.mxu0 %v307
    %396 = vmatprep.subr.bf16.mxu0 0
    %397 = vmatpush1.bf16.msra.mxu0 %v308
    %398 = vmatprep.subr.bf16.mxu0 0
    %399 = vmatpush1.bf16.msra.mxu0 %v309
    %400 = vmatprep.subr.bf16.mxu0 0
    %401 = vmatpush1.bf16.msra.mxu0 %v310
    %402 = vmatprep.subr.bf16.mxu0 0
    %403 = vmatpush1.bf16.msra.mxu0 %v311
    %404 = vmatprep.mubr.bf16.mxu0 %v145
    %405 = vmatmul.mubr.bf16.gmra.mrb[0].mxu0 %v131
    %v406 = vpop.f32.mrb[0].mxu0
    %v407 = vadd.f32 %v106, %v406
    %v408 = vpop.f32.mrb[0].mxu0
    %v409 = vpop.f32.mrb[0].mxu0
    %v410 = vpop.f32.mrb[0].mxu0
    %411 = vdwg.mxu0
    %412 = vmatprep.subr.bf16.mxu0 0
    %413 = vmatpush1.bf16.msra.mxu0 %v312
    %414 = vmatprep.subr.bf16.mxu0 0
    %415 = vmatpush1.bf16.msra.mxu0 %v313
    %416 = vmatprep.subr.bf16.mxu0 0
    %417 = vmatpush1.bf16.msra.mxu0 %v314
    %418 = vmatprep.subr.bf16.mxu0 0
    %419 = vmatpush1.bf16.msra.mxu0 %v315
    %420 = vmatprep.subr.bf16.mxu0 0
    %421 = vmatpush1.bf16.msra.mxu0 %v316
    %422 = vmatprep.subr.bf16.mxu0 0
    %423 = vmatpush1.bf16.msra.mxu0 %v317
    %424 = vmatprep.subr.bf16.mxu0 0
    %425 = vmatpush1.bf16.msra.mxu0 %v318
    %426 = vmatprep.subr.bf16.mxu0 0
    %427 = vmatpush1.bf16.msra.mxu0 %v319
    %428 = vmatprep.subr.bf16.mxu0 0
    %429 = vmatpush1.bf16.msra.mxu0 %v320
    %430 = vmatprep.subr.bf16.mxu0 0
    %431 = vmatpush1.bf16.msra.mxu0 %v321
    %432 = vmatprep.subr.bf16.mxu0 0
    %433 = vmatpush1.bf16.msra.mxu0 %v322
    %434 = vmatprep.subr.bf16.mxu0 0
    %435 = vmatpush1.bf16.msra.mxu0 %v323
    %436 = vmatprep.subr.bf16.mxu0 0
    %437 = vmatpush1.bf16.msra.mxu0 %v324
    %438 = vmatprep.subr.bf16.mxu0 0
    %439 = vmatpush1.bf16.msra.mxu0 %v325
    %440 = vmatprep.subr.bf16.mxu0 0
    %441 = vmatpush1.bf16.msra.mxu0 %v326
    %442 = vmatprep.subr.bf16.mxu0 0
    %443 = vmatpush1.bf16.msra.mxu0 %v327
    %444 = vmatprep.mubr.bf16.mxu0 %v147
    %445 = vmatmul.mubr.bf16.gmra.mrb[0].mxu0 %v146
    %v446 = vpop.f32.mrb[0].mxu0
    %v447 = vadd.f32 %v407, %v446
    %v448 = vpop.f32.mrb[0].mxu0
    %v449 = vpop.f32.mrb[0].mxu0
    %v450 = vpop.f32.mrb[0].mxu0
    %451 = vdwg.mxu0
    %452 = vmatprep.subr.bf16.mxu0 0
    %453 = vmatpush1.bf16.msra.mxu0 %v328
    %454 = vmatprep.subr.bf16.mxu0 0
    %455 = vmatpush1.bf16.msra.mxu0 %v329
    %456 = vmatprep.subr.bf16.mxu0 0
    %457 = vmatpush1.bf16.msra.mxu0 %v330
    %458 = vmatprep.subr.bf16.mxu0 0
    %459 = vmatpush1.bf16.msra.mxu0 %v331
    %460 = vmatprep.subr.bf16.mxu0 0
    %461 = vmatpush1.bf16.msra.mxu0 0
    %462 = vmatprep.subr.bf16.mxu0 0
    %463 = vmatpush1.bf16.msra.mxu0 0
    %464 = vmatprep.subr.bf16.mxu0 0
    %465 = vmatpush1.bf16.msra.mxu0 0
    %466 = vmatprep.subr.bf16.mxu0 0
    %467 = vmatpush1.bf16.msra.mxu0 0
    %468 = vmatprep.subr.bf16.mxu0 0
    %469 = vmatpush1.bf16.msra.mxu0 0
    %470 = vmatprep.subr.bf16.mxu0 0
    %471 = vmatpush1.bf16.msra.mxu0 0
    %472 = vmatprep.subr.bf16.mxu0 0
    %473 = vmatpush1.bf16.msra.mxu0 0
    %474 = vmatprep.subr.bf16.mxu0 0
    %475 = vmatpush1.bf16.msra.mxu0 0
    %476 = vmatprep.subr.bf16.mxu0 0
    %477 = vmatpush1.bf16.msra.mxu0 0
    %478 = vmatprep.subr.bf16.mxu0 0
    %479 = vmatpush1.bf16.msra.mxu0 0
    %480 = vmatprep.subr.bf16.mxu0 0
    %481 = vmatpush1.bf16.msra.mxu0 0
    %482 = vmatprep.subr.bf16.mxu0 0
    %483 = vmatpush1.bf16.msra.mxu0 0
    %484 = vmatprep.mubr.bf16.mxu0 0
    %485 = vmatmul.mubr.bf16.gmra.mrb[0].mxu0 %v370
    %v486 = vpop.f32.mrb[0].mxu0
    %v487 = vadd.f32 %v447, %v486
    %v488 = vpop.f32.mrb[0].mxu0
    %v489 = vpop.f32.mrb[0].mxu0
    %v490 = vpop.f32.mrb[0].mxu0
    %491 = vdwg.mxu0
    %v492 = vmax.f32 %v487, 0.0
    %v493 = vpack.c.bf16 %v492, %v492
    %v494 = vld [vmem:[%s3] sm:$0xff]
    %v495 = vld [vmem:[%s3 + $0x8] sm:$0xff]
    %v496 = vld [vmem:[%s3 + $0x10] sm:$0xff]
    %v497 = vld [vmem:[%s3 + $0x18] sm:$0xff]
    %v498 = vld [vmem:[%s3 + $0x20] sm:$0xff]
    %v499 = vld [vmem:[%s3 + $0x28] sm:$0xff]
    %v500 = vld [vmem:[%s3 + $0x30] sm:$0xff]
    %v501 = vld [vmem:[%s3 + $0x38] sm:$0xff]
    %v502 = vld [vmem:[%s3 + $0x40] sm:$0xff]
    %v503 = vld [vmem:[%s3 + $0x48] sm:$0xff]
    %v504 = vld [vmem:[%s3 + $0x50] sm:$0xff]
    %v505 = vld [vmem:[%s3 + $0x58] sm:$0xff]
    %v506 = vld [vmem:[%s3 + $0x60] sm:$0xff]
    %v507 = vld [vmem:[%s3 + $0x68] sm:$0xff]
    %v508 = vld [vmem:[%s3 + $0x70] sm:$0xff]
    %v509 = vld [vmem:[%s3 + $0x78] sm:$0xff]
    %v510 = vld [vmem:[%s3 + $0x80] sm:$0xff]
    %v511 = vld [vmem:[%s3 + $0x88] sm:$0xff]
    %v512 = vld [vmem:[%s3 + $0x90] sm:$0xff]
    %v513 = vld [vmem:[%s3 + $0x98] sm:$0xff]
    %v514 = vld [vmem:[%s3 + $0xa0] sm:$0xff]
    %v515 = vld [vmem:[%s3 + $0xa8] sm:$0xff]
    %v516 = vld [vmem:[%s3 + $0xb0] sm:$0xff]
    %v517 = vld [vmem:[%s3 + $0xb8] sm:$0xff]
    %v518 = vld [vmem:[%s3 + $0xc0] sm:$0xff]
    %v519 = vld [vmem:[%s3 + $0xc8] sm:$0xff]
    %v520 = vld [vmem:[%s3 + $0xd0] sm:$0xff]
    %v521 = vld [vmem:[%s3 + $0xd8] sm:$0xff]
    %v522 = vld [vmem:[%s3 + $0xe0] sm:$0xff]
    %v523 = vld [vmem:[%s3 + $0xe8] sm:$0xff]
    %v524 = vld [vmem:[%s3 + $0xf0] sm:$0xff]
    %v525 = vld [vmem:[%s3 + $0xf8] sm:$0xff]
    %v526 = vld [vmem:[%s4] sm:$0xff]
    %v528 = vlaneseq
    %v529 = vshrl.u32 %v528, 7
    %v530 = vsub.s32 0, %v529
    %v531 = vrot.slane %v526, %v530
    %v532 = vlaneseq
    %v533 = vshrl.u32 %v532, 7
    %v534 = vsub.s32 1, %v533
    %v535 = vrot.slane %v526, %v534
    %v536 = vlaneseq
    %v537 = vshrl.u32 %v536, 7
    %v538 = vsub.s32 2, %v537
    %v539 = vrot.slane %v526, %v538
    %v540 = vlaneseq
    %v541 = vshrl.u32 %v540, 7
    %v542 = vsub.s32 3, %v541
    %v543 = vrot.slane %v526, %v542
    %v544 = vlaneseq
    %v545 = vshrl.u32 %v544, 7
    %v546 = vsub.s32 4, %v545
    %v547 = vrot.slane %v526, %v546
    %v548 = vlaneseq
    %v549 = vshrl.u32 %v548, 7
    %v550 = vsub.s32 5, %v549
    %v551 = vrot.slane %v526, %v550
    %v552 = vlaneseq
    %v553 = vshrl.u32 %v552, 7
    %v554 = vsub.s32 6, %v553
    %v555 = vrot.slane %v526, %v554
    %v556 = vlaneseq
    %v557 = vshrl.u32 %v556, 7
    %v558 = vsub.s32 7, %v557
    %v559 = vrot.slane %v526, %v558
    %v600 = vunpack.c.l.b16 %v494
    %v601 = vunpack.c.h.b16 %v494
    %v602 = vunpack.c.l.b16 %v495
    %v603 = vunpack.c.h.b16 %v495
    %v604 = vunpack.c.l.b16 %v496
    %v605 = vunpack.c.h.b16 %v496
    %v606 = vunpack.c.l.b16 %v497
    %v607 = vunpack.c.h.b16 %v497
    %v608 = vunpack.c.l.b16 %v498
    %v609 = vunpack.c.h.b16 %v498
    %v610 = vunpack.c.l.b16 %v499
    %v611 = vunpack.c.h.b16 %v499
    %v612 = vunpack.c.l.b16 %v500
    %v613 = vunpack.c.h.b16 %v500
    %v614 = vunpack.c.l.b16 %v501
    %v615 = vunpack.c.h.b16 %v501
    %v616 = vunpack.c.l.b16 %v502
    %v617 = vunpack.c.h.b16 %v502
    %v618 = vunpack.c.l.b16 %v503
    %v619 = vunpack.c.h.b16 %v503
    %v620 = vunpack.c.l.b16 %v504
    %v621 = vunpack.c.h.b16 %v504
    %v622 = vunpack.c.l.b16 %v505
    %v623 = vunpack.c.h.b16 %v505
    %v624 = vunpack.c.l.b16 %v506
    %v625 = vunpack.c.h.b16 %v506
    %v626 = vunpack.c.l.b16 %v507
    %v627 = vunpack.c.h.b16 %v507
    %v628 = vunpack.c.l.b16 %v508
    %v629 = vunpack.c.h.b16 %v508
    %v630 = vunpack.c.l.b16 %v509
    %v631 = vunpack.c.h.b16 %v509
    %v632 = vunpack.c.l.b16 %v510
    %v633 = vunpack.c.h.b16 %v510
    %v634 = vunpack.c.l.b16 %v511
    %v635 = vunpack.c.h.b16 %v511
    %v636 = vunpack.c.l.b16 %v512
    %v637 = vunpack.c.h.b16 %v512
    %v638 = vunpack.c.l.b16 %v513
    %v639 = vunpack.c.h.b16 %v513
    %v640 = vunpack.c.l.b16 %v514
    %v641 = vunpack.c.h.b16 %v514
    %v642 = vunpack.c.l.b16 %v515
    %v643 = vunpack.c.h.b16 %v515
    %v644 = vunpack.c.l.b16 %v516
    %v645 = vunpack.c.h.b16 %v516
    %v646 = vunpack.c.l.b16 %v517
    %v647 = vunpack.c.h.b16 %v517
    %v648 = vunpack.c.l.b16 %v518
    %v649 = vunpack.c.h.b16 %v518
    %v650 = vunpack.c.l.b16 %v519
    %v651 = vunpack.c.h.b16 %v519
    %v652 = vunpack.c.l.b16 %v520
    %v653 = vunpack.c.h.b16 %v520
    %v654 = vunpack.c.l.b16 %v521
    %v655 = vunpack.c.h.b16 %v521
    %v656 = vunpack.c.l.b16 %v522
    %v657 = vunpack.c.h.b16 %v522
    %v658 = vunpack.c.l.b16 %v523
    %v659 = vunpack.c.h.b16 %v523
    %v660 = vunpack.c.l.b16 %v524
    %v661 = vunpack.c.h.b16 %v524
    %v662 = vunpack.c.l.b16 %v525
    %v663 = vunpack.c.h.b16 %v525
    %v664 = vpack.c.b16 %v608, %v600
    %v665 = vpack.c.b16 %v609, %v601
    %v666 = vpack.c.b16 %v610, %v602
    %v667 = vpack.c.b16 %v611, %v603
    %v668 = vpack.c.b16 %v612, %v604
    %v669 = vpack.c.b16 %v613, %v605
    %v670 = vpack.c.b16 %v614, %v606
    %v671 = vpack.c.b16 %v615, %v607
    %v672 = vpack.c.b16 %v624, %v616
    %v673 = vpack.c.b16 %v625, %v617
    %v674 = vpack.c.b16 %v626, %v618
    %v675 = vpack.c.b16 %v627, %v619
    %v676 = vpack.c.b16 %v628, %v620
    %v677 = vpack.c.b16 %v629, %v621
    %v678 = vpack.c.b16 %v630, %v622
    %v679 = vpack.c.b16 %v631, %v623
    %v680 = vpack.c.b16 %v640, %v632
    %v681 = vpack.c.b16 %v641, %v633
    %v682 = vpack.c.b16 %v642, %v634
    %v683 = vpack.c.b16 %v643, %v635
    %v684 = vpack.c.b16 %v644, %v636
    %v685 = vpack.c.b16 %v645, %v637
    %v686 = vpack.c.b16 %v646, %v638
    %v687 = vpack.c.b16 %v647, %v639
    %v688 = vpack.c.b16 %v656, %v648
    %v689 = vpack.c.b16 %v657, %v649
    %v690 = vpack.c.b16 %v658, %v650
    %v691 = vpack.c.b16 %v659, %v651
    %v692 = vpack.c.b16 %v660, %v652
    %v693 = vpack.c.b16 %v661, %v653
    %v694 = vpack.c.b16 %v662, %v654
    %v695 = vpack.c.b16 %v663, %v655
    %v729 = vsel %vm368, %v493, 0
    %731 = vmatprep.subr.bf16.mxu0 %v665
    %732 = vmatpush1.bf16.msra.mxu0 %v664
    %733 = vmatprep.subr.bf16.mxu0 %v673
    %734 = vmatpush1.bf16.msra.mxu0 %v672
    %735 = vmatprep.subr.bf16.mxu0 %v681
    %736 = vmatpush1.bf16.msra.mxu0 %v680
    %737 = vmatprep.subr.bf16.mxu0 %v689
    %738 = vmatpush1.bf16.msra.mxu0 %v688
    %739 = vmatprep.subr.bf16.mxu0 0
    %740 = vmatpush1.bf16.msra.mxu0 0
    %741 = vmatprep.subr.bf16.mxu0 0
    %742 = vmatpush1.bf16.msra.mxu0 0
    %743 = vmatprep.subr.bf16.mxu0 0
    %744 = vmatpush1.bf16.msra.mxu0 0
    %745 = vmatprep.subr.bf16.mxu0 0
    %746 = vmatpush1.bf16.msra.mxu0 0
    %747 = vmatprep.subr.bf16.mxu0 0
    %748 = vmatpush1.bf16.msra.mxu0 0
    %749 = vmatprep.subr.bf16.mxu0 0
    %750 = vmatpush1.bf16.msra.mxu0 0
    %751 = vmatprep.subr.bf16.mxu0 0
    %752 = vmatpush1.bf16.msra.mxu0 0
    %753 = vmatprep.subr.bf16.mxu0 0
    %754 = vmatpush1.bf16.msra.mxu0 0
    %755 = vmatprep.subr.bf16.mxu0 0
    %756 = vmatpush1.bf16.msra.mxu0 0
    %757 = vmatprep.subr.bf16.mxu0 0
    %758 = vmatpush1.bf16.msra.mxu0 0
    %759 = vmatprep.subr.bf16.mxu0 0
    %760 = vmatpush1.bf16.msra.mxu0 0
    %761 = vmatprep.subr.bf16.mxu0 0
    %762 = vmatpush1.bf16.msra.mxu0 0
    %763 = vmatprep.mubr.bf16.mxu0 0
    %764 = vmatmul.mubr.bf16.gmra.mrb[0].mxu0 %v729
    %v765 = vpop.f32.mrb[0].mxu0
    %v766 = vadd.f32 %v531, %v765
    %v767 = vpop.f32.mrb[0].mxu0
    %v768 = vadd.f32 %v535, %v767
    %v769 = vpop.f32.mrb[0].mxu0
    %v770 = vpop.f32.mrb[0].mxu0
    %771 = vdwg.mxu0
    %772 = vmatprep.subr.bf16.mxu0 %v667
    %773 = vmatpush1.bf16.msra.mxu0 %v666
    %774 = vmatprep.subr.bf16.mxu0 %v675
    %775 = vmatpush1.bf16.msra.mxu0 %v674
    %776 = vmatprep.subr.bf16.mxu0 %v683
    %777 = vmatpush1.bf16.msra.mxu0 %v682
    %778 = vmatprep.subr.bf16.mxu0 %v691
    %779 = vmatpush1.bf16.msra.mxu0 %v690
    %780 = vmatprep.subr.bf16.mxu0 0
    %781 = vmatpush1.bf16.msra.mxu0 0
    %782 = vmatprep.subr.bf16.mxu0 0
    %783 = vmatpush1.bf16.msra.mxu0 0
    %784 = vmatprep.subr.bf16.mxu0 0
    %785 = vmatpush1.bf16.msra.mxu0 0
    %786 = vmatprep.subr.bf16.mxu0 0
    %787 = vmatpush1.bf16.msra.mxu0 0
    %788 = vmatprep.subr.bf16.mxu0 0
    %789 = vmatpush1.bf16.msra.mxu0 0
    %790 = vmatprep.subr.bf16.mxu0 0
    %791 = vmatpush1.bf16.msra.mxu0 0
    %792 = vmatprep.subr.bf16.mxu0 0
    %793 = vmatpush1.bf16.msra.mxu0 0
    %794 = vmatprep.subr.bf16.mxu0 0
    %795 = vmatpush1.bf16.msra.mxu0 0
    %796 = vmatprep.subr.bf16.mxu0 0
    %797 = vmatpush1.bf16.msra.mxu0 0
    %798 = vmatprep.subr.bf16.mxu0 0
    %799 = vmatpush1.bf16.msra.mxu0 0
    %800 = vmatprep.subr.bf16.mxu0 0
    %801 = vmatpush1.bf16.msra.mxu0 0
    %802 = vmatprep.subr.bf16.mxu0 0
    %803 = vmatpush1.bf16.msra.mxu0 0
    %804 = vmatprep.mubr.bf16.mxu0 0
    %805 = vmatmul.mubr.bf16.gmra.mrb[0].mxu0 %v729
    %v806 = vpop.f32.mrb[0].mxu0
    %v807 = vadd.f32 %v539, %v806
    %v808 = vpop.f32.mrb[0].mxu0
    %v809 = vadd.f32 %v543, %v808
    %v810 = vpop.f32.mrb[0].mxu0
    %v811 = vpop.f32.mrb[0].mxu0
    %812 = vdwg.mxu0
    %813 = vmatprep.subr.bf16.mxu0 %v669
    %814 = vmatpush1.bf16.msra.mxu0 %v668
    %815 = vmatprep.subr.bf16.mxu0 %v677
    %816 = vmatpush1.bf16.msra.mxu0 %v676
    %817 = vmatprep.subr.bf16.mxu0 %v685
    %818 = vmatpush1.bf16.msra.mxu0 %v684
    %819 = vmatprep.subr.bf16.mxu0 %v693
    %820 = vmatpush1.bf16.msra.mxu0 %v692
    %821 = vmatprep.subr.bf16.mxu0 0
    %822 = vmatpush1.bf16.msra.mxu0 0
    %823 = vmatprep.subr.bf16.mxu0 0
    %824 = vmatpush1.bf16.msra.mxu0 0
    %825 = vmatprep.subr.bf16.mxu0 0
    %826 = vmatpush1.bf16.msra.mxu0 0
    %827 = vmatprep.subr.bf16.mxu0 0
    %828 = vmatpush1.bf16.msra.mxu0 0
    %829 = vmatprep.subr.bf16.mxu0 0
    %830 = vmatpush1.bf16.msra.mxu0 0
    %831 = vmatprep.subr.bf16.mxu0 0
    %832 = vmatpush1.bf16.msra.mxu0 0
    %833 = vmatprep.subr.bf16.mxu0 0
    %834 = vmatpush1.bf16.msra.mxu0 0
    %835 = vmatprep.subr.bf16.mxu0 0
    %836 = vmatpush1.bf16.msra.mxu0 0
    %837 = vmatprep.subr.bf16.mxu0 0
    %838 = vmatpush1.bf16.msra.mxu0 0
    %839 = vmatprep.subr.bf16.mxu0 0
    %840 = vmatpush1.bf16.msra.mxu0 0
    %841 = vmatprep.subr.bf16.mxu0 0
    %842 = vmatpush1.bf16.msra.mxu0 0
    %843 = vmatprep.subr.bf16.mxu0 0
    %844 = vmatpush1.bf16.msra.mxu0 0
    %845 = vmatprep.mubr.bf16.mxu0 0
    %846 = vmatmul.mubr.bf16.gmra.mrb[0].mxu0 %v729
    %v847 = vpop.f32.mrb[0].mxu0
    %v848 = vadd.f32 %v547, %v847
    %v849 = vpop.f32.mrb[0].mxu0
    %v850 = vadd.f32 %v551, %v849
    %v851 = vpop.f32.mrb[0].mxu0
    %v852 = vpop.f32.mrb[0].mxu0
    %853 = vdwg.mxu0
    %854 = vmatprep.subr.bf16.mxu0 %v671
    %855 = vmatpush1.bf16.msra.mxu0 %v670
    %856 = vmatprep.subr.bf16.mxu0 %v679
    %857 = vmatpush1.bf16.msra.mxu0 %v678
    %858 = vmatprep.subr.bf16.mxu0 %v687
    %859 = vmatpush1.bf16.msra.mxu0 %v686
    %860 = vmatprep.subr.bf16.mxu0 %v695
    %861 = vmatpush1.bf16.msra.mxu0 %v694
    %862 = vmatprep.subr.bf16.mxu0 0
    %863 = vmatpush1.bf16.msra.mxu0 0
    %864 = vmatprep.subr.bf16.mxu0 0
    %865 = vmatpush1.bf16.msra.mxu0 0
    %866 = vmatprep.subr.bf16.mxu0 0
    %867 = vmatpush1.bf16.msra.mxu0 0
    %868 = vmatprep.subr.bf16.mxu0 0
    %869 = vmatpush1.bf16.msra.mxu0 0
    %870 = vmatprep.subr.bf16.mxu0 0
    %871 = vmatpush1.bf16.msra.mxu0 0
    %872 = vmatprep.subr.bf16.mxu0 0
    %873 = vmatpush1.bf16.msra.mxu0 0
    %874 = vmatprep.subr.bf16.mxu0 0
    %875 = vmatpush1.bf16.msra.mxu0 0
    %876 = vmatprep.subr.bf16.mxu0 0
    %877 = vmatpush1.bf16.msra.mxu0 0
    %878 = vmatprep.subr.bf16.mxu0 0
    %879 = vmatpush1.bf16.msra.mxu0 0
    %880 = vmatprep.subr.bf16.mxu0 0
    %881 = vmatpush1.bf16.msra.mxu0 0
    %882 = vmatprep.subr.bf16.mxu0 0
    %883 = vmatpush1.bf16.msra.mxu0 0
    %884 = vmatprep.subr.bf16.mxu0 0
    %885 = vmatpush1.bf16.msra.mxu0 0
    %886 = vmatprep.mubr.bf16.mxu0 0
    %887 = vmatmul.mubr.bf16.gmra.mrb[0].mxu0 %v729
    %v888 = vpop.f32.mrb[0].mxu0
    %v889 = vadd.f32 %v555, %v888
    %v890 = vpop.f32.mrb[0].mxu0
    %v891 = vadd.f32 %v559, %v890
    %v892 = vpop.f32.mrb[0].mxu0
    %v893 = vpop.f32.mrb[0].mxu0
    %894 = vdwg.mxu0
    %v895 = vmax.f32 %v766, 0.0
    %v896 = vmax.f32 %v768, 0.0
    %v897 = vmax.f32 %v807, 0.0
    %v898 = vmax.f32 %v809, 0.0
    %v899 = vmax.f32 %v848, 0.0
    %v900 = vmax.f32 %v850, 0.0
    %v901 = vmax.f32 %v889, 0.0
    %v902 = vmax.f32 %v891, 0.0
    %v903 = vpack.c.bf16 %v895, %v895
    %v904 = vpack.c.bf16 %v896, %v896
    %v905 = vpack.c.bf16 %v897, %v897
    %v906 = vpack.c.bf16 %v898, %v898
    %v907 = vpack.c.bf16 %v899, %v899
    %v908 = vpack.c.bf16 %v900, %v900
    %v909 = vpack.c.bf16 %v901, %v901
    %v910 = vpack.c.bf16 %v902, %v902
    %v911 = vld [vmem:[%s5] sm:$0xf]
    %v912 = vld [vmem:[%s5 + $0x4] sm:$0xf]
    %v913 = vld [vmem:[%s5 + $0x8] sm:$0xf]
    %v914 = vld [vmem:[%s5 + $0xc] sm:$0xf]
    %v915 = vld [vmem:[%s5 + $0x10] sm:$0xf]
    %v916 = vld [vmem:[%s5 + $0x14] sm:$0xf]
    %v917 = vld [vmem:[%s5 + $0x18] sm:$0xf]
    %v918 = vld [vmem:[%s5 + $0x1c] sm:$0xf]
    %v919 = vld [vmem:[%s5 + $0x20] sm:$0xf]
    %v920 = vld [vmem:[%s5 + $0x24] sm:$0xf]
    %v921 = vld [vmem:[%s5 + $0x28] sm:$0xf]
    %v922 = vld [vmem:[%s5 + $0x2c] sm:$0xf]
    %v923 = vld [vmem:[%s5 + $0x30] sm:$0xf]
    %v924 = vld [vmem:[%s5 + $0x34] sm:$0xf]
    %v925 = vld [vmem:[%s5 + $0x38] sm:$0xf]
    %v926 = vld [vmem:[%s5 + $0x3c] sm:$0xf]
    %v927 = vld [vmem:[%s5 + $0x40] sm:$0xf]
    %v928 = vld [vmem:[%s5 + $0x44] sm:$0xf]
    %v929 = vld [vmem:[%s5 + $0x48] sm:$0xf]
    %v930 = vld [vmem:[%s5 + $0x4c] sm:$0xf]
    %v931 = vld [vmem:[%s5 + $0x50] sm:$0xf]
    %v932 = vld [vmem:[%s5 + $0x54] sm:$0xf]
    %v933 = vld [vmem:[%s5 + $0x58] sm:$0xf]
    %v934 = vld [vmem:[%s5 + $0x5c] sm:$0xf]
    %v935 = vld [vmem:[%s5 + $0x60] sm:$0xf]
    %v936 = vld [vmem:[%s5 + $0x64] sm:$0xf]
    %v937 = vld [vmem:[%s5 + $0x68] sm:$0xf]
    %v938 = vld [vmem:[%s5 + $0x6c] sm:$0xf]
    %v939 = vld [vmem:[%s5 + $0x70] sm:$0xf]
    %v940 = vld [vmem:[%s5 + $0x74] sm:$0xf]
    %v941 = vld [vmem:[%s5 + $0x78] sm:$0xf]
    %v942 = vld [vmem:[%s5 + $0x7c] sm:$0xf]
    %v943 = vld [vmem:[%s5 + $0x80] sm:$0xf]
    %v944 = vld [vmem:[%s5 + $0x84] sm:$0xf]
    %v945 = vld [vmem:[%s5 + $0x88] sm:$0xf]
    %v946 = vld [vmem:[%s5 + $0x8c] sm:$0xf]
    %v947 = vld [vmem:[%s5 + $0x90] sm:$0xf]
    %v948 = vld [vmem:[%s5 + $0x94] sm:$0xf]
    %v949 = vld [vmem:[%s5 + $0x98] sm:$0xf]
    %v950 = vld [vmem:[%s5 + $0x9c] sm:$0xf]
    %v951 = vld [vmem:[%s5 + $0xa0] sm:$0xf]
    %v952 = vld [vmem:[%s5 + $0xa4] sm:$0xf]
    %v953 = vld [vmem:[%s5 + $0xa8] sm:$0xf]
    %v954 = vld [vmem:[%s5 + $0xac] sm:$0xf]
    %v955 = vld [vmem:[%s5 + $0xb0] sm:$0xf]
    %v956 = vld [vmem:[%s5 + $0xb4] sm:$0xf]
    %v957 = vld [vmem:[%s5 + $0xb8] sm:$0xf]
    %v958 = vld [vmem:[%s5 + $0xbc] sm:$0xf]
    %v959 = vld [vmem:[%s5 + $0xc0] sm:$0xf]
    %v960 = vld [vmem:[%s5 + $0xc4] sm:$0xf]
    %v961 = vld [vmem:[%s5 + $0xc8] sm:$0xf]
    %v962 = vld [vmem:[%s5 + $0xcc] sm:$0xf]
    %v963 = vld [vmem:[%s5 + $0xd0] sm:$0xf]
    %v964 = vld [vmem:[%s5 + $0xd4] sm:$0xf]
    %v965 = vld [vmem:[%s5 + $0xd8] sm:$0xf]
    %v966 = vld [vmem:[%s5 + $0xdc] sm:$0xf]
    %v967 = vld [vmem:[%s5 + $0xe0] sm:$0xf]
    %v968 = vld [vmem:[%s5 + $0xe4] sm:$0xf]
    %v969 = vld [vmem:[%s5 + $0xe8] sm:$0xf]
    %v970 = vld [vmem:[%s5 + $0xec] sm:$0xf]
    %v971 = vld [vmem:[%s5 + $0xf0] sm:$0xf]
    %v972 = vld [vmem:[%s5 + $0xf4] sm:$0xf]
    %v973 = vld [vmem:[%s5 + $0xf8] sm:$0xf]
    %v974 = vld [vmem:[%s5 + $0xfc] sm:$0xf]
    %v975 = vld [vmem:[%s5 + $0x100] sm:$0xf]
    %v976 = vld [vmem:[%s5 + $0x104] sm:$0xf]
    %v977 = vld [vmem:[%s5 + $0x108] sm:$0xf]
    %v978 = vld [vmem:[%s5 + $0x10c] sm:$0xf]
    %v979 = vld [vmem:[%s5 + $0x110] sm:$0xf]
    %v980 = vld [vmem:[%s5 + $0x114] sm:$0xf]
    %v981 = vld [vmem:[%s5 + $0x118] sm:$0xf]
    %v982 = vld [vmem:[%s5 + $0x11c] sm:$0xf]
    %v983 = vld [vmem:[%s5 + $0x120] sm:$0xf]
    %v984 = vld [vmem:[%s5 + $0x124] sm:$0xf]
    %v985 = vld [vmem:[%s5 + $0x128] sm:$0xf]
    %v986 = vld [vmem:[%s5 + $0x12c] sm:$0xf]
    %v987 = vld [vmem:[%s5 + $0x130] sm:$0xf]
    %v988 = vld [vmem:[%s5 + $0x134] sm:$0xf]
    %v989 = vld [vmem:[%s5 + $0x138] sm:$0xf]
    %v990 = vld [vmem:[%s5 + $0x13c] sm:$0xf]
    %v991 = vld [vmem:[%s5 + $0x140] sm:$0xf]
    %v992 = vld [vmem:[%s5 + $0x144] sm:$0xf]
    %v993 = vld [vmem:[%s5 + $0x148] sm:$0xf]
    %v994 = vld [vmem:[%s5 + $0x14c] sm:$0xf]
    %v995 = vld [vmem:[%s5 + $0x150] sm:$0xf]
    %v996 = vld [vmem:[%s5 + $0x154] sm:$0xf]
    %v997 = vld [vmem:[%s5 + $0x158] sm:$0xf]
    %v998 = vld [vmem:[%s5 + $0x15c] sm:$0xf]
    %v999 = vld [vmem:[%s5 + $0x160] sm:$0xf]
    %v1000 = vld [vmem:[%s5 + $0x164] sm:$0xf]
    %v1001 = vld [vmem:[%s5 + $0x168] sm:$0xf]
    %v1002 = vld [vmem:[%s5 + $0x16c] sm:$0xf]
    %v1003 = vld [vmem:[%s5 + $0x170] sm:$0xf]
    %v1004 = vld [vmem:[%s5 + $0x174] sm:$0xf]
    %v1005 = vld [vmem:[%s5 + $0x178] sm:$0xf]
    %v1006 = vld [vmem:[%s5 + $0x17c] sm:$0xf]
    %v1007 = vld [vmem:[%s5 + $0x180] sm:$0xf]
    %v1008 = vld [vmem:[%s5 + $0x184] sm:$0xf]
    %v1009 = vld [vmem:[%s5 + $0x188] sm:$0xf]
    %v1010 = vld [vmem:[%s5 + $0x18c] sm:$0xf]
    %v1011 = vld [vmem:[%s5 + $0x190] sm:$0xf]
    %v1012 = vld [vmem:[%s5 + $0x194] sm:$0xf]
    %v1013 = vld [vmem:[%s5 + $0x198] sm:$0xf]
    %v1014 = vld [vmem:[%s5 + $0x19c] sm:$0xf]
    %v1015 = vld [vmem:[%s5 + $0x1a0] sm:$0xf]
    %v1016 = vld [vmem:[%s5 + $0x1a4] sm:$0xf]
    %v1017 = vld [vmem:[%s5 + $0x1a8] sm:$0xf]
    %v1018 = vld [vmem:[%s5 + $0x1ac] sm:$0xf]
    %v1019 = vld [vmem:[%s5 + $0x1b0] sm:$0xf]
    %v1020 = vld [vmem:[%s5 + $0x1b4] sm:$0xf]
    %v1021 = vld [vmem:[%s5 + $0x1b8] sm:$0xf]
    %v1022 = vld [vmem:[%s5 + $0x1bc] sm:$0xf]
    %v1023 = vld [vmem:[%s5 + $0x1c0] sm:$0xf]
    %v1024 = vld [vmem:[%s5 + $0x1c4] sm:$0xf]
    %v1025 = vld [vmem:[%s5 + $0x1c8] sm:$0xf]
    %v1026 = vld [vmem:[%s5 + $0x1cc] sm:$0xf]
    %v1027 = vld [vmem:[%s5 + $0x1d0] sm:$0xf]
    %v1028 = vld [vmem:[%s5 + $0x1d4] sm:$0xf]
    %v1029 = vld [vmem:[%s5 + $0x1d8] sm:$0xf]
    %v1030 = vld [vmem:[%s5 + $0x1dc] sm:$0xf]
    %v1031 = vld [vmem:[%s5 + $0x1e0] sm:$0xf]
    %v1032 = vld [vmem:[%s5 + $0x1e4] sm:$0xf]
    %v1033 = vld [vmem:[%s5 + $0x1e8] sm:$0xf]
    %v1034 = vld [vmem:[%s5 + $0x1ec] sm:$0xf]
    %v1035 = vld [vmem:[%s5 + $0x1f0] sm:$0xf]
    %v1036 = vld [vmem:[%s5 + $0x1f4] sm:$0xf]
    %v1037 = vld [vmem:[%s5 + $0x1f8] sm:$0xf]
    %v1038 = vld [vmem:[%s5 + $0x1fc] sm:$0xf]
    %v1039 = vld [vmem:[%s6] sm:$0x1]
    %v1041 = vlaneseq
    %v1042 = vshrl.u32 %v1041, 7
    %v1043 = vsub.s32 0, %v1042
    %v1044 = vrot.slane %v1039, %v1043
    %v1174 = vunpack.c.l.b16 %v911
    %v1175 = vunpack.c.l.b16 %v912
    %v1176 = vunpack.c.l.b16 %v913
    %v1177 = vunpack.c.l.b16 %v914
    %v1178 = vunpack.c.l.b16 %v915
    %v1179 = vunpack.c.l.b16 %v916
    %v1180 = vunpack.c.l.b16 %v917
    %v1181 = vunpack.c.l.b16 %v918
    %v1182 = vunpack.c.l.b16 %v919
    %v1183 = vunpack.c.l.b16 %v920
    %v1184 = vunpack.c.l.b16 %v921
    %v1185 = vunpack.c.l.b16 %v922
    %v1186 = vunpack.c.l.b16 %v923
    %v1187 = vunpack.c.l.b16 %v924
    %v1188 = vunpack.c.l.b16 %v925
    %v1189 = vunpack.c.l.b16 %v926
    %v1190 = vunpack.c.l.b16 %v927
    %v1191 = vunpack.c.l.b16 %v928
    %v1192 = vunpack.c.l.b16 %v929
    %v1193 = vunpack.c.l.b16 %v930
    %v1194 = vunpack.c.l.b16 %v931
    %v1195 = vunpack.c.l.b16 %v932
    %v1196 = vunpack.c.l.b16 %v933
    %v1197 = vunpack.c.l.b16 %v934
    %v1198 = vunpack.c.l.b16 %v935
    %v1199 = vunpack.c.l.b16 %v936
    %v1200 = vunpack.c.l.b16 %v937
    %v1201 = vunpack.c.l.b16 %v938
    %v1202 = vunpack.c.l.b16 %v939
    %v1203 = vunpack.c.l.b16 %v940
    %v1204 = vunpack.c.l.b16 %v941
    %v1205 = vunpack.c.l.b16 %v942
    %v1206 = vunpack.c.l.b16 %v943
    %v1207 = vunpack.c.l.b16 %v944
    %v1208 = vunpack.c.l.b16 %v945
    %v1209 = vunpack.c.l.b16 %v946
    %v1210 = vunpack.c.l.b16 %v947
    %v1211 = vunpack.c.l.b16 %v948
    %v1212 = vunpack.c.l.b16 %v949
    %v1213 = vunpack.c.l.b16 %v950
    %v1214 = vunpack.c.l.b16 %v951
    %v1215 = vunpack.c.l.b16 %v952
    %v1216 = vunpack.c.l.b16 %v953
    %v1217 = vunpack.c.l.b16 %v954
    %v1218 = vunpack.c.l.b16 %v955
    %v1219 = vunpack.c.l.b16 %v956
    %v1220 = vunpack.c.l.b16 %v957
    %v1221 = vunpack.c.l.b16 %v958
    %v1222 = vunpack.c.l.b16 %v959
    %v1223 = vunpack.c.l.b16 %v960
    %v1224 = vunpack.c.l.b16 %v961
    %v1225 = vunpack.c.l.b16 %v962
    %v1226 = vunpack.c.l.b16 %v963
    %v1227 = vunpack.c.l.b16 %v964
    %v1228 = vunpack.c.l.b16 %v965
    %v1229 = vunpack.c.l.b16 %v966
    %v1230 = vunpack.c.l.b16 %v967
    %v1231 = vunpack.c.l.b16 %v968
    %v1232 = vunpack.c.l.b16 %v969
    %v1233 = vunpack.c.l.b16 %v970
    %v1234 = vunpack.c.l.b16 %v971
    %v1235 = vunpack.c.l.b16 %v972
    %v1236 = vunpack.c.l.b16 %v973
    %v1237 = vunpack.c.l.b16 %v974
    %v1238 = vunpack.c.l.b16 %v975
    %v1239 = vunpack.c.l.b16 %v976
    %v1240 = vunpack.c.l.b16 %v977
    %v1241 = vunpack.c.l.b16 %v978
    %v1242 = vunpack.c.l.b16 %v979
    %v1243 = vunpack.c.l.b16 %v980
    %v1244 = vunpack.c.l.b16 %v981
    %v1245 = vunpack.c.l.b16 %v982
    %v1246 = vunpack.c.l.b16 %v983
    %v1247 = vunpack.c.l.b16 %v984
    %v1248 = vunpack.c.l.b16 %v985
    %v1249 = vunpack.c.l.b16 %v986
    %v1250 = vunpack.c.l.b16 %v987
    %v1251 = vunpack.c.l.b16 %v988
    %v1252 = vunpack.c.l.b16 %v989
    %v1253 = vunpack.c.l.b16 %v990
    %v1254 = vunpack.c.l.b16 %v991
    %v1255 = vunpack.c.l.b16 %v992
    %v1256 = vunpack.c.l.b16 %v993
    %v1257 = vunpack.c.l.b16 %v994
    %v1258 = vunpack.c.l.b16 %v995
    %v1259 = vunpack.c.l.b16 %v996
    %v1260 = vunpack.c.l.b16 %v997
    %v1261 = vunpack.c.l.b16 %v998
    %v1262 = vunpack.c.l.b16 %v999
    %v1263 = vunpack.c.l.b16 %v1000
    %v1264 = vunpack.c.l.b16 %v1001
    %v1265 = vunpack.c.l.b16 %v1002
    %v1266 = vunpack.c.l.b16 %v1003
    %v1267 = vunpack.c.l.b16 %v1004
    %v1268 = vunpack.c.l.b16 %v1005
    %v1269 = vunpack.c.l.b16 %v1006
    %v1270 = vunpack.c.l.b16 %v1007
    %v1271 = vunpack.c.l.b16 %v1008
    %v1272 = vunpack.c.l.b16 %v1009
    %v1273 = vunpack.c.l.b16 %v1010
    %v1274 = vunpack.c.l.b16 %v1011
    %v1275 = vunpack.c.l.b16 %v1012
    %v1276 = vunpack.c.l.b16 %v1013
    %v1277 = vunpack.c.l.b16 %v1014
    %v1278 = vunpack.c.l.b16 %v1015
    %v1279 = vunpack.c.l.b16 %v1016
    %v1280 = vunpack.c.l.b16 %v1017
    %v1281 = vunpack.c.l.b16 %v1018
    %v1282 = vunpack.c.l.b16 %v1019
    %v1283 = vunpack.c.l.b16 %v1020
    %v1284 = vunpack.c.l.b16 %v1021
    %v1285 = vunpack.c.l.b16 %v1022
    %v1286 = vunpack.c.l.b16 %v1023
    %v1287 = vunpack.c.l.b16 %v1024
    %v1288 = vunpack.c.l.b16 %v1025
    %v1289 = vunpack.c.l.b16 %v1026
    %v1290 = vunpack.c.l.b16 %v1027
    %v1291 = vunpack.c.l.b16 %v1028
    %v1292 = vunpack.c.l.b16 %v1029
    %v1293 = vunpack.c.l.b16 %v1030
    %v1294 = vunpack.c.l.b16 %v1031
    %v1295 = vunpack.c.l.b16 %v1032
    %v1296 = vunpack.c.l.b16 %v1033
    %v1297 = vunpack.c.l.b16 %v1034
    %v1298 = vunpack.c.l.b16 %v1035
    %v1299 = vunpack.c.l.b16 %v1036
    %v1300 = vunpack.c.l.b16 %v1037
    %v1301 = vunpack.c.l.b16 %v1038
    %v1302 = vpack.c.b16 %v1175, %v1174
    %v1303 = vpack.c.b16 %v1177, %v1176
    %v1304 = vpack.c.b16 %v1179, %v1178
    %v1305 = vpack.c.b16 %v1181, %v1180
    %v1306 = vpack.c.b16 %v1183, %v1182
    %v1307 = vpack.c.b16 %v1185, %v1184
    %v1308 = vpack.c.b16 %v1187, %v1186
    %v1309 = vpack.c.b16 %v1189, %v1188
    %v1310 = vpack.c.b16 %v1191, %v1190
    %v1311 = vpack.c.b16 %v1193, %v1192
    %v1312 = vpack.c.b16 %v1195, %v1194
    %v1313 = vpack.c.b16 %v1197, %v1196
    %v1314 = vpack.c.b16 %v1199, %v1198
    %v1315 = vpack.c.b16 %v1201, %v1200
    %v1316 = vpack.c.b16 %v1203, %v1202
    %v1317 = vpack.c.b16 %v1205, %v1204
    %v1318 = vpack.c.b16 %v1207, %v1206
    %v1319 = vpack.c.b16 %v1209, %v1208
    %v1320 = vpack.c.b16 %v1211, %v1210
    %v1321 = vpack.c.b16 %v1213, %v1212
    %v1322 = vpack.c.b16 %v1215, %v1214
    %v1323 = vpack.c.b16 %v1217, %v1216
    %v1324 = vpack.c.b16 %v1219, %v1218
    %v1325 = vpack.c.b16 %v1221, %v1220
    %v1326 = vpack.c.b16 %v1223, %v1222
    %v1327 = vpack.c.b16 %v1225, %v1224
    %v1328 = vpack.c.b16 %v1227, %v1226
    %v1329 = vpack.c.b16 %v1229, %v1228
    %v1330 = vpack.c.b16 %v1231, %v1230
    %v1331 = vpack.c.b16 %v1233, %v1232
    %v1332 = vpack.c.b16 %v1235, %v1234
    %v1333 = vpack.c.b16 %v1237, %v1236
    %v1334 = vpack.c.b16 %v1239, %v1238
    %v1335 = vpack.c.b16 %v1241, %v1240
    %v1336 = vpack.c.b16 %v1243, %v1242
    %v1337 = vpack.c.b16 %v1245, %v1244
    %v1338 = vpack.c.b16 %v1247, %v1246
    %v1339 = vpack.c.b16 %v1249, %v1248
    %v1340 = vpack.c.b16 %v1251, %v1250
    %v1341 = vpack.c.b16 %v1253, %v1252
    %v1342 = vpack.c.b16 %v1255, %v1254
    %v1343 = vpack.c.b16 %v1257, %v1256
    %v1344 = vpack.c.b16 %v1259, %v1258
    %v1345 = vpack.c.b16 %v1261, %v1260
    %v1346 = vpack.c.b16 %v1263, %v1262
    %v1347 = vpack.c.b16 %v1265, %v1264
    %v1348 = vpack.c.b16 %v1267, %v1266
    %v1349 = vpack.c.b16 %v1269, %v1268
    %v1350 = vpack.c.b16 %v1271, %v1270
    %v1351 = vpack.c.b16 %v1273, %v1272
    %v1352 = vpack.c.b16 %v1275, %v1274
    %v1353 = vpack.c.b16 %v1277, %v1276
    %v1354 = vpack.c.b16 %v1279, %v1278
    %v1355 = vpack.c.b16 %v1281, %v1280
    %v1356 = vpack.c.b16 %v1283, %v1282
    %v1357 = vpack.c.b16 %v1285, %v1284
    %v1358 = vpack.c.b16 %v1287, %v1286
    %v1359 = vpack.c.b16 %v1289, %v1288
    %v1360 = vpack.c.b16 %v1291, %v1290
    %v1361 = vpack.c.b16 %v1293, %v1292
    %v1362 = vpack.c.b16 %v1295, %v1294
    %v1363 = vpack.c.b16 %v1297, %v1296
    %v1364 = vpack.c.b16 %v1299, %v1298
    %v1365 = vpack.c.b16 %v1301, %v1300
    %1430 = vmatprep.subr.bf16.mxu0 0
    %1431 = vmatpush1.bf16.msra.mxu0 %v1302
    %1432 = vmatprep.subr.bf16.mxu0 0
    %1433 = vmatpush1.bf16.msra.mxu0 %v1303
    %1434 = vmatprep.subr.bf16.mxu0 0
    %1435 = vmatpush1.bf16.msra.mxu0 %v1304
    %1436 = vmatprep.subr.bf16.mxu0 0
    %1437 = vmatpush1.bf16.msra.mxu0 %v1305
    %1438 = vmatprep.subr.bf16.mxu0 0
    %1439 = vmatpush1.bf16.msra.mxu0 %v1306
    %1440 = vmatprep.subr.bf16.mxu0 0
    %1441 = vmatpush1.bf16.msra.mxu0 %v1307
    %1442 = vmatprep.subr.bf16.mxu0 0
    %1443 = vmatpush1.bf16.msra.mxu0 %v1308
    %1444 = vmatprep.subr.bf16.mxu0 0
    %1445 = vmatpush1.bf16.msra.mxu0 %v1309
    %1446 = vmatprep.subr.bf16.mxu0 0
    %1447 = vmatpush1.bf16.msra.mxu0 %v1310
    %1448 = vmatprep.subr.bf16.mxu0 0
    %1449 = vmatpush1.bf16.msra.mxu0 %v1311
    %1450 = vmatprep.subr.bf16.mxu0 0
    %1451 = vmatpush1.bf16.msra.mxu0 %v1312
    %1452 = vmatprep.subr.bf16.mxu0 0
    %1453 = vmatpush1.bf16.msra.mxu0 %v1313
    %1454 = vmatprep.subr.bf16.mxu0 0
    %1455 = vmatpush1.bf16.msra.mxu0 %v1314
    %1456 = vmatprep.subr.bf16.mxu0 0
    %1457 = vmatpush1.bf16.msra.mxu0 %v1315
    %1458 = vmatprep.subr.bf16.mxu0 0
    %1459 = vmatpush1.bf16.msra.mxu0 %v1316
    %1460 = vmatprep.subr.bf16.mxu0 0
    %1461 = vmatpush1.bf16.msra.mxu0 %v1317
    %1462 = vmatprep.mubr.bf16.mxu0 %v904
    %1463 = vmatmul.mubr.bf16.gmra.mrb[0].mxu0 %v903
    %v1464 = vpop.f32.mrb[0].mxu0
    %v1465 = vadd.f32 %v1044, %v1464
    %v1466 = vpop.f32.mrb[0].mxu0
    %v1467 = vpop.f32.mrb[0].mxu0
    %v1468 = vpop.f32.mrb[0].mxu0
    %1469 = vdwg.mxu0
    %1470 = vmatprep.subr.bf16.mxu0 0
    %1471 = vmatpush1.bf16.msra.mxu0 %v1318
    %1472 = vmatprep.subr.bf16.mxu0 0
    %1473 = vmatpush1.bf16.msra.mxu0 %v1319
    %1474 = vmatprep.subr.bf16.mxu0 0
    %1475 = vmatpush1.bf16.msra.mxu0 %v1320
    %1476 = vmatprep.subr.bf16.mxu0 0
    %1477 = vmatpush1.bf16.msra.mxu0 %v1321
    %1478 = vmatprep.subr.bf16.mxu0 0
    %1479 = vmatpush1.bf16.msra.mxu0 %v1322
    %1480 = vmatprep.subr.bf16.mxu0 0
    %1481 = vmatpush1.bf16.msra.mxu0 %v1323
    %1482 = vmatprep.subr.bf16.mxu0 0
    %1483 = vmatpush1.bf16.msra.mxu0 %v1324
    %1484 = vmatprep.subr.bf16.mxu0 0
    %1485 = vmatpush1.bf16.msra.mxu0 %v1325
    %1486 = vmatprep.subr.bf16.mxu0 0
    %1487 = vmatpush1.bf16.msra.mxu0 %v1326
    %1488 = vmatprep.subr.bf16.mxu0 0
    %1489 = vmatpush1.bf16.msra.mxu0 %v1327
    %1490 = vmatprep.subr.bf16.mxu0 0
    %1491 = vmatpush1.bf16.msra.mxu0 %v1328
    %1492 = vmatprep.subr.bf16.mxu0 0
    %1493 = vmatpush1.bf16.msra.mxu0 %v1329
    %1494 = vmatprep.subr.bf16.mxu0 0
    %1495 = vmatpush1.bf16.msra.mxu0 %v1330
    %1496 = vmatprep.subr.bf16.mxu0 0
    %1497 = vmatpush1.bf16.msra.mxu0 %v1331
    %1498 = vmatprep.subr.bf16.mxu0 0
    %1499 = vmatpush1.bf16.msra.mxu0 %v1332
    %1500 = vmatprep.subr.bf16.mxu0 0
    %1501 = vmatpush1.bf16.msra.mxu0 %v1333
    %1502 = vmatprep.mubr.bf16.mxu0 %v906
    %1503 = vmatmul.mubr.bf16.gmra.mrb[0].mxu0 %v905
    %v1504 = vpop.f32.mrb[0].mxu0
    %v1505 = vadd.f32 %v1465, %v1504
    %v1506 = vpop.f32.mrb[0].mxu0
    %v1507 = vpop.f32.mrb[0].mxu0
    %v1508 = vpop.f32.mrb[0].mxu0
    %1509 = vdwg.mxu0
    %1510 = vmatprep.subr.bf16.mxu0 0
    %1511 = vmatpush1.bf16.msra.mxu0 %v1334
    %1512 = vmatprep.subr.bf16.mxu0 0
    %1513 = vmatpush1.bf16.msra.mxu0 %v1335
    %1514 = vmatprep.subr.bf16.mxu0 0
    %1515 = vmatpush1.bf16.msra.mxu0 %v1336
    %1516 = vmatprep.subr.bf16.mxu0 0
    %1517 = vmatpush1.bf16.msra.mxu0 %v1337
    %1518 = vmatprep.subr.bf16.mxu0 0
    %1519 = vmatpush1.bf16.msra.mxu0 %v1338
    %1520 = vmatprep.subr.bf16.mxu0 0
    %1521 = vmatpush1.bf16.msra.mxu0 %v1339
    %1522 = vmatprep.subr.bf16.mxu0 0
    %1523 = vmatpush1.bf16.msra.mxu0 %v1340
    %1524 = vmatprep.subr.bf16.mxu0 0
    %1525 = vmatpush1.bf16.msra.mxu0 %v1341
    %1526 = vmatprep.subr.bf16.mxu0 0
    %1527 = vmatpush1.bf16.msra.mxu0 %v1342
    %1528 = vmatprep.subr.bf16.mxu0 0
    %1529 = vmatpush1.bf16.msra.mxu0 %v1343
    %1530 = vmatprep.subr.bf16.mxu0 0
    %1531 = vmatpush1.bf16.msra.mxu0 %v1344
    %1532 = vmatprep.subr.bf16.mxu0 0
    %1533 = vmatpush1.bf16.msra.mxu0 %v1345
    %1534 = vmatprep.subr.bf16.mxu0 0
    %1535 = vmatpush1.bf16.msra.mxu0 %v1346
    %1536 = vmatprep.subr.bf16.mxu0 0
    %1537 = vmatpush1.bf16.msra.mxu0 %v1347
    %1538 = vmatprep.subr.bf16.mxu0 0
    %1539 = vmatpush1.bf16.msra.mxu0 %v1348
    %1540 = vmatprep.subr.bf16.mxu0 0
    %1541 = vmatpush1.bf16.msra.mxu0 %v1349
    %1542 = vmatprep.mubr.bf16.mxu0 %v908
    %1543 = vmatmul.mubr.bf16.gmra.mrb[0].mxu0 %v907
    %v1544 = vpop.f32.mrb[0].mxu0
    %v1545 = vadd.f32 %v1505, %v1544
    %v1546 = vpop.f32.mrb[0].mxu0
    %v1547 = vpop.f32.mrb[0].mxu0
    %v1548 = vpop.f32.mrb[0].mxu0
    %1549 = vdwg.mxu0
    %1550 = vmatprep.subr.bf16.mxu0 0
    %1551 = vmatpush1.bf16.msra.mxu0 %v1350
    %1552 = vmatprep.subr.bf16.mxu0 0
    %1553 = vmatpush1.bf16.msra.mxu0 %v1351
    %1554 = vmatprep.subr.bf16.mxu0 0
    %1555 = vmatpush1.bf16.msra.mxu0 %v1352
    %1556 = vmatprep.subr.bf16.mxu0 0
    %1557 = vmatpush1.bf16.msra.mxu0 %v1353
    %1558 = vmatprep.subr.bf16.mxu0 0
    %1559 = vmatpush1.bf16.msra.mxu0 %v1354
    %1560 = vmatprep.subr.bf16.mxu0 0
    %1561 = vmatpush1.bf16.msra.mxu0 %v1355
    %1562 = vmatprep.subr.bf16.mxu0 0
    %1563 = vmatpush1.bf16.msra.mxu0 %v1356
    %1564 = vmatprep.subr.bf16.mxu0 0
    %1565 = vmatpush1.bf16.msra.mxu0 %v1357
    %1566 = vmatprep.subr.bf16.mxu0 0
    %1567 = vmatpush1.bf16.msra.mxu0 %v1358
    %1568 = vmatprep.subr.bf16.mxu0 0
    %1569 = vmatpush1.bf16.msra.mxu0 %v1359
    %1570 = vmatprep.subr.bf16.mxu0 0
    %1571 = vmatpush1.bf16.msra.mxu0 %v1360
    %1572 = vmatprep.subr.bf16.mxu0 0
    %1573 = vmatpush1.bf16.msra.mxu0 %v1361
    %1574 = vmatprep.subr.bf16.mxu0 0
    %1575 = vmatpush1.bf16.msra.mxu0 %v1362
    %1576 = vmatprep.subr.bf16.mxu0 0
    %1577 = vmatpush1.bf16.msra.mxu0 %v1363
    %1578 = vmatprep.subr.bf16.mxu0 0
    %1579 = vmatpush1.bf16.msra.mxu0 %v1364
    %1580 = vmatprep.subr.bf16.mxu0 0
    %1581 = vmatpush1.bf16.msra.mxu0 %v1365
    %1582 = vmatprep.mubr.bf16.mxu0 %v910
    %1583 = vmatmul.mubr.bf16.gmra.mrb[0].mxu0 %v909
    %v1584 = vpop.f32.mrb[0].mxu0
    %v1585 = vadd.f32 %v1545, %v1584
    %v1586 = vpop.f32.mrb[0].mxu0
    %v1587 = vpop.f32.mrb[0].mxu0
    %v1588 = vpop.f32.mrb[0].mxu0
    %1589 = vdwg.mxu0
    %1591 = vset.pattern.permute.xlu0 6
    %1592 = vperm.xlu0 %1591, %v1585
    %v1593 = vpop.permute.xlu0 %1592
    %v1595 = vadd.f32 %v1593, %v1585
    %vm1596 = vcmask 41984
    %v1597 = vsel %vm1596, %v1585, 0.0
    %1598 = vadd.xlane.f32.xlu0 %v1597
    %v1599 = vpop.xlane.xlu0 %1598
    %v1600 = vrcp.pop 6.0
    %v1601 = vmul.f32 %v1599, %v1600
    %v1602 = vsub.f32 %v1595, %v1601
    %1603 = vst.msk [vmem:[#allocation2] sm:$0x3] %vm1596, %v1602
    // Predicated region
    $region30: #{dueling_dqn_forward.5} parent=1 // pred_check
      _
    $region31: #{dueling_dqn_forward.5} parent=1 // pred_check_branch
      %1605 = sbr.rel (0) target = $region33
    $region32: #{dueling_dqn_forward.5} parent=1 // pred_region
      %s1607 = ssub.s32 32, 32
      %1608 = vsyncadd [#allocation3], %s1607
      %s1610 = sshll.u32 [#allocation2], 4
      %s1611 = int_to_ptr.vmem [resolvable:$true] %s1610
      %1613 = dma.vmem_to_hbm [thread:$0]  %s1611, 32, %s7, [#allocation3]
    $region33: #{dueling_dqn_forward.5} parent=1 // pred_fallthru
      _
    // Predicated region
    $region34: #{dueling_dqn_forward.5} parent=1 // pred_check
      _
    $region35: #{dueling_dqn_forward.5} parent=1 // pred_check_branch
      %1615 = sbr.rel (0) target = $region37
    $region36: #{dueling_dqn_forward.5} parent=1 // pred_region
      %1616 = dma.done [#allocation3], 32
    $region37: #{dueling_dqn_forward.5} parent=1 // pred_fallthru
      _
    %1617 = vsyncpa [#allocation3], 1

</llo_original>
